<compile_context>
chip_gen: v5e
topology: v5e:2x2
jax: 0.10.0
libtpu: 0.0.40
codegen_flags: <defaults>
</compile_context>

<pallas_src>
import math
import functools

import jax
import jax.numpy as jnp
from jax import lax
from jax.experimental import pallas as pl
from jax.experimental.pallas import tpu as pltpu


def _layernorm(x, g, b, eps=1e-5):
    mu = jnp.mean(x, axis=-1, keepdims=True)
    var = jnp.mean((x - mu) * (x - mu), axis=-1, keepdims=True)
    return (x - mu) * lax.rsqrt(var + eps) * g + b


def cross_attention_kernel(q_ref, k_ref, v_ref,
                           g1_ref, b1_ref, g2_ref, b2_ref,
                           wq_ref, wk_ref, wv_ref, wo_ref,
                           bq_ref, bk_ref, bv_ref, bo_ref,
                           o_ref, *, num_heads, head_dim):
    Bblk, Sq, E = q_ref.shape
    _, Skv, _ = k_ref.shape
    H, Dh = num_heads, head_dim
    rows_q = Bblk * Sq
    rows_kv = Bblk * Skv
    mxu_dtype = wq_ref.dtype                 # weights are pre-cast host-side

    g1 = g1_ref[...].astype(jnp.float32)
    b1 = b1_ref[...].astype(jnp.float32)

    # LayerNorm1 in f32 (lane-dense over E).  The f32 copies of q/k/v die here;
    # the pre-norm query is re-read later for the residual.
    qn = _layernorm(q_ref[...].reshape(rows_q, E).astype(jnp.float32), g1, b1).astype(mxu_dtype)
    kn = _layernorm(k_ref[...].reshape(rows_kv, E).astype(jnp.float32), g1, b1).astype(mxu_dtype)
    vn = _layernorm(v_ref[...].reshape(rows_kv, E).astype(jnp.float32), g1, b1).astype(mxu_dtype)

    # Full-width projections: K = N = E fills the MXU (1/sqrt(Dh) folded into Wq/bq).
    Q = jnp.dot(qn, wq_ref[...], preferred_element_type=jnp.float32) + bq_ref[...].astype(jnp.float32)
    K = jnp.dot(kn, wk_ref[...], preferred_element_type=jnp.float32) + bk_ref[...].astype(jnp.float32)
    V = jnp.dot(vn, wv_ref[...], preferred_element_type=jnp.float32) + bv_ref[...].astype(jnp.float32)

    score_dims = (((2,), (2,)), ((0,), (0,)))   # contract Dh, batch over Bblk
    pv_dims    = (((2,), (1,)), ((0,), (0,)))   # contract Skv, batch over Bblk

    # Per-head attention.  Heads are static lane slices; s/p/denom die each
    # iteration, only the (rows_q, Dh) ctx slice survives.  The H ctx slices
    # are joined with a single lane concatenate feeding the full-width Wo matmul.
    ctx_heads = []
    for h in range(H):
        lo = h * Dh
        Qh = Q[:, lo:lo + Dh].reshape(Bblk, Sq, Dh).astype(mxu_dtype)
        Kh = K[:, lo:lo + Dh].reshape(Bblk, Skv, Dh).astype(mxu_dtype)
        Vh = V[:, lo:lo + Dh].reshape(Bblk, Skv, Dh).astype(mxu_dtype)

        s = lax.dot_general(Qh, Kh, dimension_numbers=score_dims,
                            preferred_element_type=jnp.float32)      # (Bblk, Sq, Skv)
        s = s - jnp.max(s, axis=-1, keepdims=True)                   # shift-invariant
        p = jnp.exp(s)                                               # unnormalized probs
        denom = jnp.sum(p, axis=-1, keepdims=True)                   # (Bblk, Sq, 1)

        ctx = lax.dot_general(p.astype(mxu_dtype), Vh, dimension_numbers=pv_dims,
                              preferred_element_type=jnp.float32)    # (Bblk, Sq, Dh)
        # Deferred softmax normalization: scale over Dh instead of over Skv.
        ctx = ctx * pl.reciprocal(denom, approx=True)
        ctx_heads.append(ctx.reshape(rows_q, Dh))

    ctx_all = jnp.concatenate(ctx_heads, axis=-1).astype(mxu_dtype)  # (rows_q, E)

    # Single full-width output projection (K = E), then bias in f32.
    attended = jnp.dot(ctx_all, wo_ref[...], preferred_element_type=jnp.float32)
    attended = attended + bo_ref[...].astype(jnp.float32)

    # Residual uses the *pre-norm* query; re-read q_ref here instead of keeping
    # an f32 copy live across the whole attention section.
    q_resid = q_ref[...].reshape(rows_q, E).astype(jnp.float32)
    out = _layernorm(q_resid + attended,
                     g2_ref[...].astype(jnp.float32), b2_ref[...].astype(jnp.float32))
    o_ref[...] = out.reshape(Bblk, Sq, E).astype(o_ref.dtype)

    # TODO(synk): for long key sequences, tile Skv with an online (flash-style)
    # softmax so K/V blocks are not (Bblk, Skv, E) monoliths.


def _pick_batch_block(B, Sq, Skv, target_rows=1024):
    """Largest divisor of B with Bblk*max(Sq,Skv) <= target_rows, capped at
    B//2 so the grid always has >= 2 steps (v7x two-TensorCore sharding)."""
    cap = max(1, B // 2)
    s = max(Sq, Skv, 1)
    best = 1
    for d in range(1, cap + 1):
        if B % d == 0 and d * s <= target_rows:
            best = d
    return best


def _vmem_bytes_estimate(Bblk, Sq, Skv, E, act_itemsize, mxu_itemsize):
    """Generous resident-VMEM estimate: double-buffered activation blocks +
    (worst-case double-buffered) weights + live f32 intermediates."""
    rows_q, rows_kv = Bblk * Sq, Bblk * Skv
    io = 2 * (2 * rows_q + 2 * rows_kv) * E * act_itemsize           # q, out, k, v blocks (x2 buffers)
    wgt = 2 * (4 * E * E * mxu_itemsize + 8 * E * 4)                  # Wq/Wk/Wv/Wo + biases/LN params
    live = 4 * (6 * rows_q * E + 3 * rows_kv * E + 2 * Bblk * Sq * Skv)
    return io + wgt + live


def cross_attention(query, key, value, params, *, num_heads,
                    batch_block=None, mxu_bf16=None):
    """query: (B, Sq, E); key/value: (B, Skv, E). Returns (B, Sq, E)."""
    B, Sq, E = query.shape
    _, Skv, _ = key.shape
    assert E % num_heads == 0
    head_dim = E // num_heads
    scale = 1.0 / math.sqrt(head_dim)

    if mxu_bf16 is None:                       # default: bf16 MXU iff activations are bf16
        mxu_bf16 = (query.dtype == jnp.bfloat16)
    mxu_dtype = jnp.bfloat16 if mxu_bf16 else jnp.float32

    Bblk = batch_block if batch_block is not None else _pick_batch_block(B, Sq, Skv)
    assert B % Bblk == 0, "batch_block must divide the batch size"

    # One-time host/XLA-side prep (constant-folds under jit): fold 1/sqrt(Dh)
    # into Wq/bq and pre-cast weights to the MXU dtype (halves weight DMA for bf16).
    wq = (params["wq_t"] * scale).astype(mxu_dtype)
    wk = params["wk_t"].astype(mxu_dtype)
    wv = params["wv_t"].astype(mxu_dtype)
    wo = params["wo_t"].astype(mxu_dtype)
    bq = (params["bq"] * scale).astype(jnp.float32)
    bk = params["bk"].astype(jnp.float32)
    bv = params["bv"].astype(jnp.float32)
    bo = params["bo"].astype(jnp.float32)

    # VMEM budgeting: scoped defaults are 16 MiB (v5e) / 32 MiB (v6e, v7x);
    # v7x physical per-TC VMEM is 64 MiB, so clamp there.
    est = _vmem_bytes_estimate(Bblk, Sq, Skv, E,
                               jnp.dtype(query.dtype).itemsize,
                               jnp.dtype(mxu_dtype).itemsize)
    vmem_limit = int(min(64 << 20, est + (4 << 20))) if est > (16 << 20) else None

    # Grid-invariant params; single-buffer the big ExE weights once E >= 256
    # so they are not double-buffered (matters most on v7x's 64 MiB VMEM).
    single_buffer_weights = E >= 256

    def const_spec(shape):
        if single_buffer_weights:
            return pl.BlockSpec(shape, lambda b: (0,) * len(shape),
                                pipeline_mode=pl.Buffered(1))
        return pl.BlockSpec(shape, lambda b: (0,) * len(shape))

    kern = functools.partial(cross_attention_kernel,
                             num_heads=num_heads, head_dim=head_dim)

    return pl.pallas_call(
        kern,
        out_shape=jax.ShapeDtypeStruct((B, Sq, E), query.dtype),
        grid_spec=pltpu.PrefetchScalarGridSpec(
            num_scalar_prefetch=0,
            grid=(B // Bblk,),
            in_specs=[
                pl.BlockSpec((Bblk, Sq, E), lambda b: (b, 0, 0)),     # query block
                pl.BlockSpec((Bblk, Skv, E), lambda b: (b, 0, 0)),    # key block
                pl.BlockSpec((Bblk, Skv, E), lambda b: (b, 0, 0)),    # value block
                const_spec((1, E)), const_spec((1, E)),               # LN1 gamma / beta
                const_spec((1, E)), const_spec((1, E)),               # LN2 gamma / beta
                const_spec((E, E)), const_spec((E, E)),               # Wq (scaled), Wk
                const_spec((E, E)), const_spec((E, E)),               # Wv, Wo
                const_spec((1, E)), const_spec((1, E)),               # bq (scaled), bk
                const_spec((1, E)), const_spec((1, E)),               # bv, bo
            ],
            out_specs=pl.BlockSpec((Bblk, Sq, E), lambda b: (b, 0, 0)),
        ),
        compiler_params=pltpu.CompilerParams(
            dimension_semantics=("parallel",),       # batch grid axis: megacore-shardable
            vmem_limit_bytes=vmem_limit),
    )(query, key, value,
      params["g1"], params["b1"], params["g2"], params["b2"],
      wq, wk, wv, wo, bq, bk, bv, bo)


def reference_cross_attention(q, k, v, params, *, num_heads):
    """Pure-JAX reference mirroring PyTorch MultiheadAttention (eval mode)."""
    E = q.shape[-1]
    Dh = E // num_heads

    def ln(x, g, b):
        mu = jnp.mean(x, -1, keepdims=True)
        var = jnp.mean((x - mu) ** 2, -1, keepdims=True)
        return (x - mu) / jnp.sqrt(var + 1e-5) * g + b

    qn = ln(q, params["g1"], params["b1"])
    kn = ln(k, params["g1"], params["b1"])
    vn = ln(v, params["g1"], params["b1"])
    Q = qn @ params["wq_t"] + params["bq"]
    K = kn @ params["wk_t"] + params["bk"]
    V = vn @ params["wv_t"] + params["bv"]

    def split(x):
        B, S, _ = x.shape
        return x.reshape(B, S, num_heads, Dh).transpose(0, 2, 1, 3)

    Qh, Kh, Vh = split(Q), split(K), split(V)
    s = jnp.einsum("bhqd,bhkd->bhqk", Qh, Kh) / math.sqrt(Dh)
    p = jax.nn.softmax(s, axis=-1)
    ctx = jnp.einsum("bhqk,bhkd->bhqd", p, Vh)
    B, H, Sq, _ = ctx.shape
    ctx = ctx.transpose(0, 2, 1, 3).reshape(B, Sq, E)
    att = ctx @ params["wo_t"] + params["bo"]
    return ln(q + att, params["g2"], params["b2"])


def init_params(key, embed_dim):
    E = embed_dim
    ks = jax.random.split(key, 8)
    scale = 1.0 / math.sqrt(E)
    return {
        # attention projection weights, stored already transposed: (E_in, E_out)
        "wq_t": jax.random.uniform(ks[0], (E, E), jnp.float32, -scale, scale),
        "wk_t": jax.random.uniform(ks[1], (E, E), jnp.float32, -scale, scale),
        "wv_t": jax.random.uniform(ks[2], (E, E), jnp.float32, -scale, scale),
        "wo_t": jax.random.uniform(ks[3], (E, E), jnp.float32, -scale, scale),
        "bq": jax.random.normal(ks[4], (1, E), jnp.float32) * 0.02,
        "bk": jax.random.normal(ks[5], (1, E), jnp.float32) * 0.02,
        "bv": jax.random.normal(ks[6], (1, E), jnp.float32) * 0.02,
        "bo": jax.random.normal(ks[7], (1, E), jnp.float32) * 0.02,
        # LayerNorm params (PyTorch init: gamma=1, beta=0)
        "g1": jnp.ones((1, E), jnp.float32),
        "b1": jnp.zeros((1, E), jnp.float32),
        "g2": jnp.ones((1, E), jnp.float32),
        "b2": jnp.zeros((1, E), jnp.float32),
    }


if __name__ == "__main__":
    # Small config consistent with the module: embedding_dim=128, num_heads=4.
    # B=4 so the auto-picked Bblk=2 gives a 2-step grid (exercises megacore path).
    B, Sq, Skv, E, H = 4, 8, 8, 128, 4

    key = jax.random.PRNGKey(0)
    kq, kk, kv, kp = jax.random.split(key, 4)
    query = jax.random.normal(kq, (B, Sq, E), jnp.float32)
    keyx = jax.random.normal(kk, (B, Skv, E), jnp.float32)
    value = jax.random.normal(kv, (B, Skv, E), jnp.float32)
    params = init_params(kp, E)

    ref = reference_cross_attention(query, keyx, value, params, num_heads=H)

    # (a) f32 MXU path: tight check (headroom only for the EUP approximate
    #     reciprocal used to normalize the attention context).
    out = cross_attention(query, keyx, value, params, num_heads=H, mxu_bf16=False)
    out = jax.block_until_ready(out)
    assert out.shape == (B, Sq, E)
    assert jnp.allclose(out, ref, atol=1e-3, rtol=1e-3), "f32-MXU mismatch vs reference"

    # (b) bf16 MXU path (review recommendation for v5e/v6e/v7x): projections and
    #     attention matmuls run in bf16 with f32 accumulation; LN/softmax stay f32.
    #     Looser tolerance reflects bf16 operand rounding, not a semantic change.
    out_bf16 = cross_attention(query, keyx, value, params, num_heads=H, mxu_bf16=True)
    out_bf16 = jax.block_until_ready(out_bf16)
    assert jnp.allclose(out_bf16, ref, atol=5e-2, rtol=5e-2), "bf16-MXU mismatch vs reference"

    print("KERNEL_OK")
</pallas_src>

<mosaic_0001>
module attributes {stable_mosaic.version = 11 : i64} {
  func.func @cross_attention_kernel(%arg0: i32, %arg1: memref<2x8x128xf32, #tpu.memory_space<vmem>>, %arg2: memref<2x8x128xf32, #tpu.memory_space<vmem>>, %arg3: memref<2x8x128xf32, #tpu.memory_space<vmem>>, %arg4: memref<1x128xf32, #tpu.memory_space<vmem>>, %arg5: memref<1x128xf32, #tpu.memory_space<vmem>>, %arg6: memref<1x128xf32, #tpu.memory_space<vmem>>, %arg7: memref<1x128xf32, #tpu.memory_space<vmem>>, %arg8: memref<128x128xf32, #tpu.memory_space<vmem>>, %arg9: memref<128x128xf32, #tpu.memory_space<vmem>>, %arg10: memref<128x128xf32, #tpu.memory_space<vmem>>, %arg11: memref<128x128xf32, #tpu.memory_space<vmem>>, %arg12: memref<1x128xf32, #tpu.memory_space<vmem>>, %arg13: memref<1x128xf32, #tpu.memory_space<vmem>>, %arg14: memref<1x128xf32, #tpu.memory_space<vmem>>, %arg15: memref<1x128xf32, #tpu.memory_space<vmem>>, %arg16: memref<2x8x128xf32, #tpu.memory_space<vmem>>) attributes {dimension_semantics = [#tpu.dimension_semantics<parallel>], iteration_bounds = array<i64: 2>, scalar_prefetch = 0 : i64, scratch_operands = 0 : i64, tpu.core_type = #tpu.core_type<tc>, window_params = [{transform_indices = @transform_0, window_bounds = array<i64: 2, 8, 128>}, {transform_indices = @transform_1, window_bounds = array<i64: 2, 8, 128>}, {transform_indices = @transform_2, window_bounds = array<i64: 2, 8, 128>}, {pipeline_mode = #tpu.pipeline_mode<synchronous>, transform_indices = @transform_3, window_bounds = array<i64: 1, 128>}, {pipeline_mode = #tpu.pipeline_mode<synchronous>, transform_indices = @transform_4, window_bounds = array<i64: 1, 128>}, {pipeline_mode = #tpu.pipeline_mode<synchronous>, transform_indices = @transform_5, window_bounds = array<i64: 1, 128>}, {pipeline_mode = #tpu.pipeline_mode<synchronous>, transform_indices = @transform_6, window_bounds = array<i64: 1, 128>}, {pipeline_mode = #tpu.pipeline_mode<synchronous>, transform_indices = @transform_7, window_bounds = array<i64: 128, 128>}, {pipeline_mode = #tpu.pipeline_mode<synchronous>, transform_indices = @transform_8, window_bounds = array<i64: 128, 128>}, {pipeline_mode = #tpu.pipeline_mode<synchronous>, transform_indices = @transform_9, window_bounds = array<i64: 128, 128>}, {pipeline_mode = #tpu.pipeline_mode<synchronous>, transform_indices = @transform_10, window_bounds = array<i64: 128, 128>}, {pipeline_mode = #tpu.pipeline_mode<synchronous>, transform_indices = @transform_11, window_bounds = array<i64: 1, 128>}, {pipeline_mode = #tpu.pipeline_mode<synchronous>, transform_indices = @transform_12, window_bounds = array<i64: 1, 128>}, {pipeline_mode = #tpu.pipeline_mode<synchronous>, transform_indices = @transform_13, window_bounds = array<i64: 1, 128>}, {pipeline_mode = #tpu.pipeline_mode<synchronous>, transform_indices = @transform_14, window_bounds = array<i64: 1, 128>}, {transform_indices = @transform_15, window_bounds = array<i64: 2, 8, 128>}]} {
    %c0 = arith.constant 0 : index
    %c0_0 = arith.constant 0 : index
    %0 = vector.load %arg4[%c0, %c0_0] : memref<1x128xf32, #tpu.memory_space<vmem>>, vector<1x128xf32>
    %c0_1 = arith.constant 0 : index
    %c0_2 = arith.constant 0 : index
    %1 = vector.load %arg5[%c0_1, %c0_2] : memref<1x128xf32, #tpu.memory_space<vmem>>, vector<1x128xf32>
    %c0_3 = arith.constant 0 : index
    %c0_4 = arith.constant 0 : index
    %c0_5 = arith.constant 0 : index
    %2 = vector.load %arg1[%c0_3, %c0_4, %c0_5] : memref<2x8x128xf32, #tpu.memory_space<vmem>>, vector<2x8x128xf32>
    %3 = vector.shape_cast %2 : vector<2x8x128xf32> to vector<16x128xf32>
    %cst = arith.constant dense<0.000000e+00> : vector<16xf32>
    %4 = vector.multi_reduction <add>, %3, %cst [1] : vector<16x128xf32> to vector<16xf32>
    %5 = vector.shape_cast %4 : vector<16xf32> to vector<16x1xf32>
    %cst_6 = arith.constant 1.280000e+02 : f32
    %6 = vector.broadcast %cst_6 : f32 to vector<16x1xf32>
    %7 = arith.divf %5, %6 : vector<16x1xf32>
    %8 = vector.broadcast %7 : vector<16x1xf32> to vector<16x128xf32>
    %9 = arith.subf %3, %8 : vector<16x128xf32>
    %10 = vector.broadcast %7 : vector<16x1xf32> to vector<16x128xf32>
    %11 = arith.subf %3, %10 : vector<16x128xf32>
    %12 = arith.mulf %9, %11 : vector<16x128xf32>
    %cst_7 = arith.constant dense<0.000000e+00> : vector<16xf32>
    %13 = vector.multi_reduction <add>, %12, %cst_7 [1] : vector<16x128xf32> to vector<16xf32>
    %14 = vector.shape_cast %13 : vector<16xf32> to vector<16x1xf32>
    %cst_8 = arith.constant 1.280000e+02 : f32
    %15 = vector.broadcast %cst_8 : f32 to vector<16x1xf32>
    %16 = arith.divf %14, %15 : vector<16x1xf32>
    %17 = vector.broadcast %7 : vector<16x1xf32> to vector<16x128xf32>
    %18 = arith.subf %3, %17 : vector<16x128xf32>
    %cst_9 = arith.constant 9.99999974E-6 : f32
    %19 = vector.broadcast %cst_9 : f32 to vector<16x1xf32>
    %20 = arith.addf %16, %19 : vector<16x1xf32>
    %21 = math.rsqrt %20 : vector<16x1xf32>
    %22 = vector.broadcast %21 : vector<16x1xf32> to vector<16x128xf32>
    %23 = arith.mulf %18, %22 : vector<16x128xf32>
    %24 = vector.broadcast %0 : vector<1x128xf32> to vector<16x128xf32>
    %25 = arith.mulf %23, %24 : vector<16x128xf32>
    %26 = vector.broadcast %1 : vector<1x128xf32> to vector<16x128xf32>
    %27 = arith.addf %25, %26 : vector<16x128xf32>
    %c0_10 = arith.constant 0 : index
    %c0_11 = arith.constant 0 : index
    %c0_12 = arith.constant 0 : index
    %28 = vector.load %arg2[%c0_10, %c0_11, %c0_12] : memref<2x8x128xf32, #tpu.memory_space<vmem>>, vector<2x8x128xf32>
    %29 = vector.shape_cast %28 : vector<2x8x128xf32> to vector<16x128xf32>
    %cst_13 = arith.constant dense<0.000000e+00> : vector<16xf32>
    %30 = vector.multi_reduction <add>, %29, %cst_13 [1] : vector<16x128xf32> to vector<16xf32>
    %31 = vector.shape_cast %30 : vector<16xf32> to vector<16x1xf32>
    %cst_14 = arith.constant 1.280000e+02 : f32
    %32 = vector.broadcast %cst_14 : f32 to vector<16x1xf32>
    %33 = arith.divf %31, %32 : vector<16x1xf32>
    %34 = vector.broadcast %33 : vector<16x1xf32> to vector<16x128xf32>
    %35 = arith.subf %29, %34 : vector<16x128xf32>
    %36 = vector.broadcast %33 : vector<16x1xf32> to vector<16x128xf32>
    %37 = arith.subf %29, %36 : vector<16x128xf32>
    %38 = arith.mulf %35, %37 : vector<16x128xf32>
    %cst_15 = arith.constant dense<0.000000e+00> : vector<16xf32>
    %39 = vector.multi_reduction <add>, %38, %cst_15 [1] : vector<16x128xf32> to vector<16xf32>
    %40 = vector.shape_cast %39 : vector<16xf32> to vector<16x1xf32>
    %cst_16 = arith.constant 1.280000e+02 : f32
    %41 = vector.broadcast %cst_16 : f32 to vector<16x1xf32>
    %42 = arith.divf %40, %41 : vector<16x1xf32>
    %43 = vector.broadcast %33 : vector<16x1xf32> to vector<16x128xf32>
    %44 = arith.subf %29, %43 : vector<16x128xf32>
    %cst_17 = arith.constant 9.99999974E-6 : f32
    %45 = vector.broadcast %cst_17 : f32 to vector<16x1xf32>
    %46 = arith.addf %42, %45 : vector<16x1xf32>
    %47 = math.rsqrt %46 : vector<16x1xf32>
    %48 = vector.broadcast %47 : vector<16x1xf32> to vector<16x128xf32>
    %49 = arith.mulf %44, %48 : vector<16x128xf32>
    %50 = vector.broadcast %0 : vector<1x128xf32> to vector<16x128xf32>
    %51 = arith.mulf %49, %50 : vector<16x128xf32>
    %52 = vector.broadcast %1 : vector<1x128xf32> to vector<16x128xf32>
    %53 = arith.addf %51, %52 : vector<16x128xf32>
    %c0_18 = arith.constant 0 : index
    %c0_19 = arith.constant 0 : index
    %c0_20 = arith.constant 0 : index
    %54 = vector.load %arg3[%c0_18, %c0_19, %c0_20] : memref<2x8x128xf32, #tpu.memory_space<vmem>>, vector<2x8x128xf32>
    %55 = vector.shape_cast %54 : vector<2x8x128xf32> to vector<16x128xf32>
    %cst_21 = arith.constant dense<0.000000e+00> : vector<16xf32>
    %56 = vector.multi_reduction <add>, %55, %cst_21 [1] : vector<16x128xf32> to vector<16xf32>
    %57 = vector.shape_cast %56 : vector<16xf32> to vector<16x1xf32>
    %cst_22 = arith.constant 1.280000e+02 : f32
    %58 = vector.broadcast %cst_22 : f32 to vector<16x1xf32>
    %59 = arith.divf %57, %58 : vector<16x1xf32>
    %60 = vector.broadcast %59 : vector<16x1xf32> to vector<16x128xf32>
    %61 = arith.subf %55, %60 : vector<16x128xf32>
    %62 = vector.broadcast %59 : vector<16x1xf32> to vector<16x128xf32>
    %63 = arith.subf %55, %62 : vector<16x128xf32>
    %64 = arith.mulf %61, %63 : vector<16x128xf32>
    %cst_23 = arith.constant dense<0.000000e+00> : vector<16xf32>
    %65 = vector.multi_reduction <add>, %64, %cst_23 [1] : vector<16x128xf32> to vector<16xf32>
    %66 = vector.shape_cast %65 : vector<16xf32> to vector<16x1xf32>
    %cst_24 = arith.constant 1.280000e+02 : f32
    %67 = vector.broadcast %cst_24 : f32 to vector<16x1xf32>
    %68 = arith.divf %66, %67 : vector<16x1xf32>
    %69 = vector.broadcast %59 : vector<16x1xf32> to vector<16x128xf32>
    %70 = arith.subf %55, %69 : vector<16x128xf32>
    %cst_25 = arith.constant 9.99999974E-6 : f32
    %71 = vector.broadcast %cst_25 : f32 to vector<16x1xf32>
    %72 = arith.addf %68, %71 : vector<16x1xf32>
    %73 = math.rsqrt %72 : vector<16x1xf32>
    %74 = vector.broadcast %73 : vector<16x1xf32> to vector<16x128xf32>
    %75 = arith.mulf %70, %74 : vector<16x128xf32>
    %76 = vector.broadcast %0 : vector<1x128xf32> to vector<16x128xf32>
    %77 = arith.mulf %75, %76 : vector<16x128xf32>
    %78 = vector.broadcast %1 : vector<1x128xf32> to vector<16x128xf32>
    %79 = arith.addf %77, %78 : vector<16x128xf32>
    %c0_26 = arith.constant 0 : index
    %c0_27 = arith.constant 0 : index
    %80 = vector.load %arg8[%c0_26, %c0_27] : memref<128x128xf32, #tpu.memory_space<vmem>>, vector<128x128xf32>
    %cst_28 = arith.constant dense<0.000000e+00> : vector<16x128xf32>
    %81 = tpu.matmul %27, %80, %cst_28 {dimension_numbers = #tpu.dot_dimension_numbers<[1], [0], [0], [1], [0, 0, 1, 1], [], []>} : vector<16x128xf32>, vector<128x128xf32>, vector<16x128xf32> -> vector<16x128xf32>
    %c0_29 = arith.constant 0 : index
    %c0_30 = arith.constant 0 : index
    %82 = vector.load %arg12[%c0_29, %c0_30] : memref<1x128xf32, #tpu.memory_space<vmem>>, vector<1x128xf32>
    %83 = vector.broadcast %82 : vector<1x128xf32> to vector<16x128xf32>
    %84 = arith.addf %81, %83 : vector<16x128xf32>
    %c0_31 = arith.constant 0 : index
    %c0_32 = arith.constant 0 : index
    %85 = vector.load %arg9[%c0_31, %c0_32] : memref<128x128xf32, #tpu.memory_space<vmem>>, vector<128x128xf32>
    %cst_33 = arith.constant dense<0.000000e+00> : vector<16x128xf32>
    %86 = tpu.matmul %53, %85, %cst_33 {dimension_numbers = #tpu.dot_dimension_numbers<[1], [0], [0], [1], [0, 0, 1, 1], [], []>} : vector<16x128xf32>, vector<128x128xf32>, vector<16x128xf32> -> vector<16x128xf32>
    %c0_34 = arith.constant 0 : index
    %c0_35 = arith.constant 0 : index
    %87 = vector.load %arg13[%c0_34, %c0_35] : memref<1x128xf32, #tpu.memory_space<vmem>>, vector<1x128xf32>
    %88 = vector.broadcast %87 : vector<1x128xf32> to vector<16x128xf32>
    %89 = arith.addf %86, %88 : vector<16x128xf32>
    %c0_36 = arith.constant 0 : index
    %c0_37 = arith.constant 0 : index
    %90 = vector.load %arg10[%c0_36, %c0_37] : memref<128x128xf32, #tpu.memory_space<vmem>>, vector<128x128xf32>
    %cst_38 = arith.constant dense<0.000000e+00> : vector<16x128xf32>
    %91 = tpu.matmul %79, %90, %cst_38 {dimension_numbers = #tpu.dot_dimension_numbers<[1], [0], [0], [1], [0, 0, 1, 1], [], []>} : vector<16x128xf32>, vector<128x128xf32>, vector<16x128xf32> -> vector<16x128xf32>
    %c0_39 = arith.constant 0 : index
    %c0_40 = arith.constant 0 : index
    %92 = vector.load %arg14[%c0_39, %c0_40] : memref<1x128xf32, #tpu.memory_space<vmem>>, vector<1x128xf32>
    %93 = vector.broadcast %92 : vector<1x128xf32> to vector<16x128xf32>
    %94 = arith.addf %91, %93 : vector<16x128xf32>
    %95 = vector.extract_strided_slice %84 {offsets = [0, 0], sizes = [16, 32], strides = [1, 1]} : vector<16x128xf32> to vector<16x32xf32>
    %96 = vector.shape_cast %95 : vector<16x32xf32> to vector<2x8x32xf32>
    %97 = vector.extract_strided_slice %89 {offsets = [0, 0], sizes = [16, 32], strides = [1, 1]} : vector<16x128xf32> to vector<16x32xf32>
    %98 = vector.shape_cast %97 : vector<16x32xf32> to vector<2x8x32xf32>
    %99 = vector.extract_strided_slice %94 {offsets = [0, 0], sizes = [16, 32], strides = [1, 1]} : vector<16x128xf32> to vector<16x32xf32>
    %100 = vector.shape_cast %99 : vector<16x32xf32> to vector<2x8x32xf32>
    %cst_41 = arith.constant dense<0.000000e+00> : vector<2x8x8xf32>
    %101 = tpu.matmul %96, %98, %cst_41 {dimension_numbers = #tpu.dot_dimension_numbers<[2], [2], [1], [1], [0, 0, 0, 1, 1, 1], [0], [0]>} : vector<2x8x32xf32>, vector<2x8x32xf32>, vector<2x8x8xf32> -> vector<2x8x8xf32>
    %cst_42 = arith.constant dense<0xFF800000> : vector<2x8xf32>
    %102 = vector.multi_reduction <maximumf>, %101, %cst_42 [2] : vector<2x8x8xf32> to vector<2x8xf32>
    %103 = vector.shape_cast %102 : vector<2x8xf32> to vector<2x8x1xf32>
    %104 = vector.broadcast %103 : vector<2x8x1xf32> to vector<2x8x8xf32>
    %105 = arith.subf %101, %104 : vector<2x8x8xf32>
    %106 = math.exp %105 : vector<2x8x8xf32>
    %cst_43 = arith.constant dense<0.000000e+00> : vector<2x8xf32>
    %107 = vector.multi_reduction <add>, %106, %cst_43 [2] : vector<2x8x8xf32> to vector<2x8xf32>
    %108 = vector.shape_cast %107 : vector<2x8xf32> to vector<2x8x1xf32>
    %cst_44 = arith.constant dense<0.000000e+00> : vector<2x8x32xf32>
    %109 = tpu.matmul %106, %100, %cst_44 {dimension_numbers = #tpu.dot_dimension_numbers<[2], [1], [1], [2], [0, 0, 0, 1, 1, 2], [0], [0]>} : vector<2x8x8xf32>, vector<2x8x32xf32>, vector<2x8x32xf32> -> vector<2x8x32xf32>
    %110 = tpu.reciprocal %108 {approx = true} : vector<2x8x1xf32> -> vector<2x8x1xf32>
    %111 = vector.broadcast %110 : vector<2x8x1xf32> to vector<2x8x32xf32>
    %112 = arith.mulf %109, %111 : vector<2x8x32xf32>
    %113 = vector.shape_cast %112 : vector<2x8x32xf32> to vector<16x32xf32>
    %114 = vector.extract_strided_slice %84 {offsets = [0, 32], sizes = [16, 32], strides = [1, 1]} : vector<16x128xf32> to vector<16x32xf32>
    %115 = vector.shape_cast %114 : vector<16x32xf32> to vector<2x8x32xf32>
    %116 = vector.extract_strided_slice %89 {offsets = [0, 32], sizes = [16, 32], strides = [1, 1]} : vector<16x128xf32> to vector<16x32xf32>
    %117 = vector.shape_cast %116 : vector<16x32xf32> to vector<2x8x32xf32>
    %118 = vector.extract_strided_slice %94 {offsets = [0, 32], sizes = [16, 32], strides = [1, 1]} : vector<16x128xf32> to vector<16x32xf32>
    %119 = vector.shape_cast %118 : vector<16x32xf32> to vector<2x8x32xf32>
    %cst_45 = arith.constant dense<0.000000e+00> : vector<2x8x8xf32>
    %120 = tpu.matmul %115, %117, %cst_45 {dimension_numbers = #tpu.dot_dimension_numbers<[2], [2], [1], [1], [0, 0, 0, 1, 1, 1], [0], [0]>} : vector<2x8x32xf32>, vector<2x8x32xf32>, vector<2x8x8xf32> -> vector<2x8x8xf32>
    %cst_46 = arith.constant dense<0xFF800000> : vector<2x8xf32>
    %121 = vector.multi_reduction <maximumf>, %120, %cst_46 [2] : vector<2x8x8xf32> to vector<2x8xf32>
    %122 = vector.shape_cast %121 : vector<2x8xf32> to vector<2x8x1xf32>
    %123 = vector.broadcast %122 : vector<2x8x1xf32> to vector<2x8x8xf32>
    %124 = arith.subf %120, %123 : vector<2x8x8xf32>
    %125 = math.exp %124 : vector<2x8x8xf32>
    %cst_47 = arith.constant dense<0.000000e+00> : vector<2x8xf32>
    %126 = vector.multi_reduction <add>, %125, %cst_47 [2] : vector<2x8x8xf32> to vector<2x8xf32>
    %127 = vector.shape_cast %126 : vector<2x8xf32> to vector<2x8x1xf32>
    %cst_48 = arith.constant dense<0.000000e+00> : vector<2x8x32xf32>
    %128 = tpu.matmul %125, %119, %cst_48 {dimension_numbers = #tpu.dot_dimension_numbers<[2], [1], [1], [2], [0, 0, 0, 1, 1, 2], [0], [0]>} : vector<2x8x8xf32>, vector<2x8x32xf32>, vector<2x8x32xf32> -> vector<2x8x32xf32>
    %129 = tpu.reciprocal %127 {approx = true} : vector<2x8x1xf32> -> vector<2x8x1xf32>
    %130 = vector.broadcast %129 : vector<2x8x1xf32> to vector<2x8x32xf32>
    %131 = arith.mulf %128, %130 : vector<2x8x32xf32>
    %132 = vector.shape_cast %131 : vector<2x8x32xf32> to vector<16x32xf32>
    %133 = vector.extract_strided_slice %84 {offsets = [0, 64], sizes = [16, 32], strides = [1, 1]} : vector<16x128xf32> to vector<16x32xf32>
    %134 = vector.shape_cast %133 : vector<16x32xf32> to vector<2x8x32xf32>
    %135 = vector.extract_strided_slice %89 {offsets = [0, 64], sizes = [16, 32], strides = [1, 1]} : vector<16x128xf32> to vector<16x32xf32>
    %136 = vector.shape_cast %135 : vector<16x32xf32> to vector<2x8x32xf32>
    %137 = vector.extract_strided_slice %94 {offsets = [0, 64], sizes = [16, 32], strides = [1, 1]} : vector<16x128xf32> to vector<16x32xf32>
    %138 = vector.shape_cast %137 : vector<16x32xf32> to vector<2x8x32xf32>
    %cst_49 = arith.constant dense<0.000000e+00> : vector<2x8x8xf32>
    %139 = tpu.matmul %134, %136, %cst_49 {dimension_numbers = #tpu.dot_dimension_numbers<[2], [2], [1], [1], [0, 0, 0, 1, 1, 1], [0], [0]>} : vector<2x8x32xf32>, vector<2x8x32xf32>, vector<2x8x8xf32> -> vector<2x8x8xf32>
    %cst_50 = arith.constant dense<0xFF800000> : vector<2x8xf32>
    %140 = vector.multi_reduction <maximumf>, %139, %cst_50 [2] : vector<2x8x8xf32> to vector<2x8xf32>
    %141 = vector.shape_cast %140 : vector<2x8xf32> to vector<2x8x1xf32>
    %142 = vector.broadcast %141 : vector<2x8x1xf32> to vector<2x8x8xf32>
    %143 = arith.subf %139, %142 : vector<2x8x8xf32>
    %144 = math.exp %143 : vector<2x8x8xf32>
    %cst_51 = arith.constant dense<0.000000e+00> : vector<2x8xf32>
    %145 = vector.multi_reduction <add>, %144, %cst_51 [2] : vector<2x8x8xf32> to vector<2x8xf32>
    %146 = vector.shape_cast %145 : vector<2x8xf32> to vector<2x8x1xf32>
    %cst_52 = arith.constant dense<0.000000e+00> : vector<2x8x32xf32>
    %147 = tpu.matmul %144, %138, %cst_52 {dimension_numbers = #tpu.dot_dimension_numbers<[2], [1], [1], [2], [0, 0, 0, 1, 1, 2], [0], [0]>} : vector<2x8x8xf32>, vector<2x8x32xf32>, vector<2x8x32xf32> -> vector<2x8x32xf32>
    %148 = tpu.reciprocal %146 {approx = true} : vector<2x8x1xf32> -> vector<2x8x1xf32>
    %149 = vector.broadcast %148 : vector<2x8x1xf32> to vector<2x8x32xf32>
    %150 = arith.mulf %147, %149 : vector<2x8x32xf32>
    %151 = vector.shape_cast %150 : vector<2x8x32xf32> to vector<16x32xf32>
    %152 = vector.extract_strided_slice %84 {offsets = [0, 96], sizes = [16, 32], strides = [1, 1]} : vector<16x128xf32> to vector<16x32xf32>
    %153 = vector.shape_cast %152 : vector<16x32xf32> to vector<2x8x32xf32>
    %154 = vector.extract_strided_slice %89 {offsets = [0, 96], sizes = [16, 32], strides = [1, 1]} : vector<16x128xf32> to vector<16x32xf32>
    %155 = vector.shape_cast %154 : vector<16x32xf32> to vector<2x8x32xf32>
    %156 = vector.extract_strided_slice %94 {offsets = [0, 96], sizes = [16, 32], strides = [1, 1]} : vector<16x128xf32> to vector<16x32xf32>
    %157 = vector.shape_cast %156 : vector<16x32xf32> to vector<2x8x32xf32>
    %cst_53 = arith.constant dense<0.000000e+00> : vector<2x8x8xf32>
    %158 = tpu.matmul %153, %155, %cst_53 {dimension_numbers = #tpu.dot_dimension_numbers<[2], [2], [1], [1], [0, 0, 0, 1, 1, 1], [0], [0]>} : vector<2x8x32xf32>, vector<2x8x32xf32>, vector<2x8x8xf32> -> vector<2x8x8xf32>
    %cst_54 = arith.constant dense<0xFF800000> : vector<2x8xf32>
    %159 = vector.multi_reduction <maximumf>, %158, %cst_54 [2] : vector<2x8x8xf32> to vector<2x8xf32>
    %160 = vector.shape_cast %159 : vector<2x8xf32> to vector<2x8x1xf32>
    %161 = vector.broadcast %160 : vector<2x8x1xf32> to vector<2x8x8xf32>
    %162 = arith.subf %158, %161 : vector<2x8x8xf32>
    %163 = math.exp %162 : vector<2x8x8xf32>
    %cst_55 = arith.constant dense<0.000000e+00> : vector<2x8xf32>
    %164 = vector.multi_reduction <add>, %163, %cst_55 [2] : vector<2x8x8xf32> to vector<2x8xf32>
    %165 = vector.shape_cast %164 : vector<2x8xf32> to vector<2x8x1xf32>
    %cst_56 = arith.constant dense<0.000000e+00> : vector<2x8x32xf32>
    %166 = tpu.matmul %163, %157, %cst_56 {dimension_numbers = #tpu.dot_dimension_numbers<[2], [1], [1], [2], [0, 0, 0, 1, 1, 2], [0], [0]>} : vector<2x8x8xf32>, vector<2x8x32xf32>, vector<2x8x32xf32> -> vector<2x8x32xf32>
    %167 = tpu.reciprocal %165 {approx = true} : vector<2x8x1xf32> -> vector<2x8x1xf32>
    %168 = vector.broadcast %167 : vector<2x8x1xf32> to vector<2x8x32xf32>
    %169 = arith.mulf %166, %168 : vector<2x8x32xf32>
    %170 = vector.shape_cast %169 : vector<2x8x32xf32> to vector<16x32xf32>
    %171 = tpu.concatenate %113, %132, %151, %170 in 1 : vector<16x32xf32>, vector<16x32xf32>, vector<16x32xf32>, vector<16x32xf32> -> vector<16x128xf32>
    %c0_57 = arith.constant 0 : index
    %c0_58 = arith.constant 0 : index
    %172 = vector.load %arg11[%c0_57, %c0_58] : memref<128x128xf32, #tpu.memory_space<vmem>>, vector<128x128xf32>
    %cst_59 = arith.constant dense<0.000000e+00> : vector<16x128xf32>
    %173 = tpu.matmul %171, %172, %cst_59 {dimension_numbers = #tpu.dot_dimension_numbers<[1], [0], [0], [1], [0, 0, 1, 1], [], []>} : vector<16x128xf32>, vector<128x128xf32>, vector<16x128xf32> -> vector<16x128xf32>
    %c0_60 = arith.constant 0 : index
    %c0_61 = arith.constant 0 : index
    %174 = vector.load %arg15[%c0_60, %c0_61] : memref<1x128xf32, #tpu.memory_space<vmem>>, vector<1x128xf32>
    %175 = vector.broadcast %174 : vector<1x128xf32> to vector<16x128xf32>
    %176 = arith.addf %173, %175 : vector<16x128xf32>
    %c0_62 = arith.constant 0 : index
    %c0_63 = arith.constant 0 : index
    %c0_64 = arith.constant 0 : index
    %177 = vector.load %arg1[%c0_62, %c0_63, %c0_64] : memref<2x8x128xf32, #tpu.memory_space<vmem>>, vector<2x8x128xf32>
    %178 = vector.shape_cast %177 : vector<2x8x128xf32> to vector<16x128xf32>
    %179 = arith.addf %178, %176 : vector<16x128xf32>
    %c0_65 = arith.constant 0 : index
    %c0_66 = arith.constant 0 : index
    %180 = vector.load %arg6[%c0_65, %c0_66] : memref<1x128xf32, #tpu.memory_space<vmem>>, vector<1x128xf32>
    %c0_67 = arith.constant 0 : index
    %c0_68 = arith.constant 0 : index
    %181 = vector.load %arg7[%c0_67, %c0_68] : memref<1x128xf32, #tpu.memory_space<vmem>>, vector<1x128xf32>
    %cst_69 = arith.constant dense<0.000000e+00> : vector<16xf32>
    %182 = vector.multi_reduction <add>, %179, %cst_69 [1] : vector<16x128xf32> to vector<16xf32>
    %183 = vector.shape_cast %182 : vector<16xf32> to vector<16x1xf32>
    %cst_70 = arith.constant 1.280000e+02 : f32
    %184 = vector.broadcast %cst_70 : f32 to vector<16x1xf32>
    %185 = arith.divf %183, %184 : vector<16x1xf32>
    %186 = vector.broadcast %185 : vector<16x1xf32> to vector<16x128xf32>
    %187 = arith.subf %179, %186 : vector<16x128xf32>
    %188 = vector.broadcast %185 : vector<16x1xf32> to vector<16x128xf32>
    %189 = arith.subf %179, %188 : vector<16x128xf32>
    %190 = arith.mulf %187, %189 : vector<16x128xf32>
    %cst_71 = arith.constant dense<0.000000e+00> : vector<16xf32>
    %191 = vector.multi_reduction <add>, %190, %cst_71 [1] : vector<16x128xf32> to vector<16xf32>
    %192 = vector.shape_cast %191 : vector<16xf32> to vector<16x1xf32>
    %cst_72 = arith.constant 1.280000e+02 : f32
    %193 = vector.broadcast %cst_72 : f32 to vector<16x1xf32>
    %194 = arith.divf %192, %193 : vector<16x1xf32>
    %195 = vector.broadcast %185 : vector<16x1xf32> to vector<16x128xf32>
    %196 = arith.subf %179, %195 : vector<16x128xf32>
    %cst_73 = arith.constant 9.99999974E-6 : f32
    %197 = vector.broadcast %cst_73 : f32 to vector<16x1xf32>
    %198 = arith.addf %194, %197 : vector<16x1xf32>
    %199 = math.rsqrt %198 : vector<16x1xf32>
    %200 = vector.broadcast %199 : vector<16x1xf32> to vector<16x128xf32>
    %201 = arith.mulf %196, %200 : vector<16x128xf32>
    %202 = vector.broadcast %180 : vector<1x128xf32> to vector<16x128xf32>
    %203 = arith.mulf %201, %202 : vector<16x128xf32>
    %204 = vector.broadcast %181 : vector<1x128xf32> to vector<16x128xf32>
    %205 = arith.addf %203, %204 : vector<16x128xf32>
    %206 = vector.shape_cast %205 : vector<16x128xf32> to vector<2x8x128xf32>
    %c0_74 = arith.constant 0 : index
    %c0_75 = arith.constant 0 : index
    %c0_76 = arith.constant 0 : index
    %207 = vector.load %arg16[%c0_74, %c0_75, %c0_76] : memref<2x8x128xf32, #tpu.memory_space<vmem>>, vector<2x8x128xf32>
    tpu.vector_store %arg16[%c0_74, %c0_75, %c0_76], %206 {strides = array<i32>} : memref<2x8x128xf32, #tpu.memory_space<vmem>>, vector<2x8x128xf32>,
    return
  }
  func.func @transform_0(%arg0: i32) -> (i32, i32, i32) {
    %c0_i32 = arith.constant 0 : i32
    %c0_i32_0 = arith.constant 0 : i32
    %c0_i32_1 = arith.constant 0 : i32
    return %arg0, %c0_i32, %c0_i32_0 : i32, i32, i32
  }
  func.func @transform_1(%arg0: i32) -> (i32, i32, i32) {
    %c0_i32 = arith.constant 0 : i32
    %c0_i32_0 = arith.constant 0 : i32
    %c0_i32_1 = arith.constant 0 : i32
    return %arg0, %c0_i32, %c0_i32_0 : i32, i32, i32
  }
  func.func @transform_2(%arg0: i32) -> (i32, i32, i32) {
    %c0_i32 = arith.constant 0 : i32
    %c0_i32_0 = arith.constant 0 : i32
    %c0_i32_1 = arith.constant 0 : i32
    return %arg0, %c0_i32, %c0_i32_0 : i32, i32, i32
  }
  func.func @transform_3(%arg0: i32) -> (i32, i32) {
    %c0_i32 = arith.constant 0 : i32
    %c0_i32_0 = arith.constant 0 : i32
    %c0_i32_1 = arith.constant 0 : i32
    return %c0_i32, %c0_i32_0 : i32, i32
  }
  func.func @transform_4(%arg0: i32) -> (i32, i32) {
    %c0_i32 = arith.constant 0 : i32
    %c0_i32_0 = arith.constant 0 : i32
    %c0_i32_1 = arith.constant 0 : i32
    return %c0_i32, %c0_i32_0 : i32, i32
  }
  func.func @transform_5(%arg0: i32) -> (i32, i32) {
    %c0_i32 = arith.constant 0 : i32
    %c0_i32_0 = arith.constant 0 : i32
    %c0_i32_1 = arith.constant 0 : i32
    return %c0_i32, %c0_i32_0 : i32, i32
  }
  func.func @transform_6(%arg0: i32) -> (i32, i32) {
    %c0_i32 = arith.constant 0 : i32
    %c0_i32_0 = arith.constant 0 : i32
    %c0_i32_1 = arith.constant 0 : i32
    return %c0_i32, %c0_i32_0 : i32, i32
  }
  func.func @transform_7(%arg0: i32) -> (i32, i32) {
    %c0_i32 = arith.constant 0 : i32
    %c0_i32_0 = arith.constant 0 : i32
    %c0_i32_1 = arith.constant 0 : i32
    return %c0_i32, %c0_i32_0 : i32, i32
  }
  func.func @transform_8(%arg0: i32) -> (i32, i32) {
    %c0_i32 = arith.constant 0 : i32
    %c0_i32_0 = arith.constant 0 : i32
    %c0_i32_1 = arith.constant 0 : i32
    return %c0_i32, %c0_i32_0 : i32, i32
  }
  func.func @transform_9(%arg0: i32) -> (i32, i32) {
    %c0_i32 = arith.constant 0 : i32
    %c0_i32_0 = arith.constant 0 : i32
    %c0_i32_1 = arith.constant 0 : i32
    return %c0_i32, %c0_i32_0 : i32, i32
  }
  func.func @transform_10(%arg0: i32) -> (i32, i32) {
    %c0_i32 = arith.constant 0 : i32
    %c0_i32_0 = arith.constant 0 : i32
    %c0_i32_1 = arith.constant 0 : i32
    return %c0_i32, %c0_i32_0 : i32, i32
  }
  func.func @transform_11(%arg0: i32) -> (i32, i32) {
    %c0_i32 = arith.constant 0 : i32
    %c0_i32_0 = arith.constant 0 : i32
    %c0_i32_1 = arith.constant 0 : i32
    return %c0_i32, %c0_i32_0 : i32, i32
  }
  func.func @transform_12(%arg0: i32) -> (i32, i32) {
    %c0_i32 = arith.constant 0 : i32
    %c0_i32_0 = arith.constant 0 : i32
    %c0_i32_1 = arith.constant 0 : i32
    return %c0_i32, %c0_i32_0 : i32, i32
  }
  func.func @transform_13(%arg0: i32) -> (i32, i32) {
    %c0_i32 = arith.constant 0 : i32
    %c0_i32_0 = arith.constant 0 : i32
    %c0_i32_1 = arith.constant 0 : i32
    return %c0_i32, %c0_i32_0 : i32, i32
  }
  func.func @transform_14(%arg0: i32) -> (i32, i32) {
    %c0_i32 = arith.constant 0 : i32
    %c0_i32_0 = arith.constant 0 : i32
    %c0_i32_1 = arith.constant 0 : i32
    return %c0_i32, %c0_i32_0 : i32, i32
  }
  func.func @transform_15(%arg0: i32) -> (i32, i32, i32) {
    %c0_i32 = arith.constant 0 : i32
    %c0_i32_0 = arith.constant 0 : i32
    %c0_i32_1 = arith.constant 0 : i32
    return %arg0, %c0_i32, %c0_i32_0 : i32, i32, i32
  }
}

</mosaic_0001>

<llo_original>
// kernel: tpu_custom_call.1
$region0: #{tpu_custom_call.1}
  #allocation0 [shape = 'u32[]', space=smem, size = 0x4, offset = 0x4, fixed_abs, tag = 'smem constant byte address 0x4 - core index']
  #allocation1 [shape = 'u32[72,128]{1,0:T(1,128)}', space=vmem, size = 0x9000, scoped, tag = 'internal scratch']
  %s0 = inlined_call_operand.hbm [shape: f32[4,8,128], index: 0, kind: input, shape index: {}]
  %s1 = inlined_call_operand.hbm [shape: f32[4,8,128], index: 1, kind: input, shape index: {}]
  %s2 = inlined_call_operand.hbm [shape: f32[4,8,128], index: 2, kind: input, shape index: {}]
  %s3 = inlined_call_operand.vmem [shape: f32[1,128], index: 3, kind: input, shape index: {}]
  %s4 = inlined_call_operand.vmem [shape: f32[1,128], index: 4, kind: input, shape index: {}]
  %s5 = inlined_call_operand.vmem [shape: f32[1,128], index: 5, kind: input, shape index: {}]
  %s6 = inlined_call_operand.vmem [shape: f32[1,128], index: 6, kind: input, shape index: {}]
  %s7 = inlined_call_operand.hbm [shape: f32[128,128], index: 7, kind: input, shape index: {}]
  %s8 = inlined_call_operand.hbm [shape: f32[128,128], index: 8, kind: input, shape index: {}]
  %s9 = inlined_call_operand.hbm [shape: f32[128,128], index: 9, kind: input, shape index: {}]
  %s10 = inlined_call_operand.hbm [shape: f32[128,128], index: 10, kind: input, shape index: {}]
  %s11 = inlined_call_operand.vmem [shape: f32[1,128], index: 11, kind: input, shape index: {}]
  %s12 = inlined_call_operand.vmem [shape: f32[1,128], index: 12, kind: input, shape index: {}]
  %s13 = inlined_call_operand.vmem [shape: f32[1,128], index: 13, kind: input, shape index: {}]
  %s14 = inlined_call_operand.vmem [shape: f32[1,128], index: 14, kind: input, shape index: {}]
  %s15 = inlined_call_operand.hbm [shape: f32[4,8,128], index: 15, kind: output, shape index: {}]
  %s16 = sld [smem:[#allocation0]]
  $region121: #{tpu_custom_call.1} parent=0
    _
  %s18 = ssub.s32 1, %s16
  %s19 = scalar_select 0, %s18, %s16
  $region1: #{tpu_custom_call.1} parent=0
    #allocation2 [shape = 'u8[16384]{0}', space=vmem, size = 0x4000, scoped, tag = 'input window, operand 0']
    #allocation3 [shape = 's32[2]{0}', space=sflag, size = 0x8, scoped, tag = 'scoped memory for tpu_custom_call.1']
    #allocation4 [shape = 's32[2]{0}', space=sflag, size = 0x8, scoped, tag = 'scoped memory for tpu_custom_call.1']
    #allocation5 [shape = 'u8[16384]{0}', space=vmem, size = 0x4000, scoped, tag = 'input window, operand 1']
    #allocation6 [shape = 's32[2]{0}', space=sflag, size = 0x8, scoped, tag = 'scoped memory for tpu_custom_call.1']
    #allocation7 [shape = 'u8[16384]{0}', space=vmem, size = 0x4000, scoped, tag = 'input window, operand 2']
    #allocation8 [shape = 'u8[65536]{0}', space=vmem, size = 0x10000, scoped, tag = 'input window, operand 7, single buffered']
    #allocation9 [shape = 's32[1]{0}', space=sflag, size = 0x4, scoped, tag = 'scoped memory for tpu_custom_call.1']
    #allocation10 [shape = 'u8[65536]{0}', space=vmem, size = 0x10000, scoped, tag = 'input window, operand 8, single buffered']
    #allocation11 [shape = 'u8[65536]{0}', space=vmem, size = 0x10000, scoped, tag = 'input window, operand 9, single buffered']
    #allocation12 [shape = 's32[1]{0}', space=sflag, size = 0x4, scoped, tag = 'scoped memory for tpu_custom_call.1']
    #allocation13 [shape = 'u8[65536]{0}', space=vmem, size = 0x10000, scoped, tag = 'input window, operand 10, single buffered']
    #allocation14 [shape = 'u8[16384]{0}', space=vmem, size = 0x4000, scoped, tag = 'output window, operand 0']
    %20 = vsyncpa [#allocation3], 0
    %s21 = scalar_lea.sflag [#allocation3], 1
    %22 = vsyncpa %s21, 0
    %23 = vsyncpa [#allocation6], 0
    %s24 = scalar_lea.sflag [#allocation6], 1
    %25 = vsyncpa %s24, 0
    %26 = vsyncpa [#allocation9], 0
    %27 = vsyncpa [#allocation12], 0
    %28 = vsyncpa [#allocation4], 0
    %s29 = scalar_lea.sflag [#allocation4], 1
    %30 = vsyncpa %s29, 0
    loop: start=0, step=1, limit=4
    $region2: #{tpu_custom_call.1} parent=1 // loop_pre_header
      _
    $region3: #{tpu_custom_call.1} parent=1 // loop_header
      %s32 = sphi 0, %s36
      %p33 = scmp.ge.s32.totalorder %s32, 4
      %s42 = sphi 0, %s44
      %s45 = sphi 0, %s42
      %s46 = sphi 0, %s45
      %s62 = sphi 0, %s46
      %s68 = sphi 0, %s70
      %s71 = sphi 0, %s68
      %s72 = sphi 0, %s71
      %s88 = sphi 0, %s72
      %s94 = sphi 0, %s96
      %s97 = sphi 0, %s94
      %s98 = sphi 0, %s97
      %s114 = sphi 0, %s98
      %s118 = sphi 0, %s118
      %s120 = sphi 0, %s118
      %s121 = sphi 0, %s120
      %s135 = sphi 0, %s121
      %s139 = sphi 0, %s139
      %s141 = sphi 0, %s139
      %s142 = sphi 0, %s141
      %s156 = sphi 0, %s142
      %s160 = sphi 0, %s160
      %s162 = sphi 0, %s160
      %s163 = sphi 0, %s162
      %s177 = sphi 0, %s163
      %s181 = sphi 0, %s181
      %s183 = sphi 0, %s181
      %s184 = sphi 0, %s183
      %s198 = sphi 0, %s184
      %s202 = sphi 0, %s202
      %s204 = sphi 0, %s202
      %s205 = sphi 0, %s204
      %s219 = sphi 0, %s205
      %s223 = sphi 0, %s223
      %s225 = sphi 0, %s223
      %s226 = sphi 0, %s225
      %s240 = sphi 0, %s226
      %s244 = sphi 0, %s244
      %s246 = sphi 0, %s244
      %s247 = sphi 0, %s246
      %s261 = sphi 0, %s247
      %s265 = sphi 0, %s265
      %s267 = sphi 0, %s265
      %s268 = sphi 0, %s267
      %s282 = sphi 0, %s268
      %s286 = sphi 0, %s286
      %s288 = sphi 0, %s286
      %s289 = sphi 0, %s288
      %s303 = sphi 0, %s289
      %s307 = sphi 0, %s307
      %s309 = sphi 0, %s307
      %s310 = sphi 0, %s309
      %s324 = sphi 0, %s310
      %s328 = sphi 0, %s328
      %s330 = sphi 0, %s328
      %s331 = sphi 0, %s330
      %s345 = sphi 0, %s331
      %s349 = sphi 0, %s349
      %s351 = sphi 0, %s349
      %s352 = sphi 0, %s351
      %s366 = sphi 0, %s352
      %s372 = sphi 0, %s374
      %s375 = sphi 0, %s372
      %s376 = sphi 0, %s375
      %s392 = sphi 0, %s376
    $region4: #{tpu_custom_call.1} parent=1 // loop_header_branch
      %35 = sbr.rel (%p33) target = $region8
    $region5: #{tpu_custom_call.1} parent=1 // loop_body
      %s37 = ssub.s32 %s32, 1
      %s38 = ssub.s32 %s32, 2
      %s39 = sadd.s32 %s32, 1
      %s40 = ssub.s32 %s32, %s39
      %p41 = scmp.eq.s32.totalorder %s40, 0
      %s43 = sadd.s32 %s42, 1
      %s44 = scalar_select %p41, %s42, %s43
      %p47 = pneg %p41
      %p48 = scmp.eq.s32.totalorder %s32, 1
      %p49 = por %p47, %p48
      %p50 = scmp.ne.s32.totalorder %s42, %s45
      %p51 = scmp.eq.s32.totalorder %s32, 0
      %p52 = por %p50, %p51
      %p53 = scmp.ne.s32.totalorder %s42, %s45
      %p54 = scmp.eq.s32.totalorder %s37, 1
      %p55 = por %p53, %p54
      %p56 = scmp.ne.s32.totalorder %s45, %s46
      %p57 = scmp.eq.s32.totalorder %s37, 0
      %p58 = por %p56, %p57
      %p59 = scmp.ne.s32.totalorder %s45, %s46
      %p60 = scmp.eq.s32.totalorder %s38, 1
      %p61 = por %p59, %p60
      %p63 = scmp.ne.s32.totalorder %s46, %s62
      %p64 = scmp.eq.s32.totalorder %s38, 0
      %p65 = por %p63, %p64
      %s66 = ssub.s32 %s32, %s39
      %p67 = scmp.eq.s32.totalorder %s66, 0
      %s69 = sadd.s32 %s68, 1
      %s70 = scalar_select %p67, %s68, %s69
      %p73 = pneg %p67
      %p74 = scmp.eq.s32.totalorder %s32, 1
      %p75 = por %p73, %p74
      %p76 = scmp.ne.s32.totalorder %s68, %s71
      %p77 = scmp.eq.s32.totalorder %s32, 0
      %p78 = por %p76, %p77
      %p79 = scmp.ne.s32.totalorder %s68, %s71
      %p80 = scmp.eq.s32.totalorder %s37, 1
      %p81 = por %p79, %p80
      %p82 = scmp.ne.s32.totalorder %s71, %s72
      %p83 = scmp.eq.s32.totalorder %s37, 0
      %p84 = por %p82, %p83
      %p85 = scmp.ne.s32.totalorder %s71, %s72
      %p86 = scmp.eq.s32.totalorder %s38, 1
      %p87 = por %p85, %p86
      %p89 = scmp.ne.s32.totalorder %s72, %s88
      %p90 = scmp.eq.s32.totalorder %s38, 0
      %p91 = por %p89, %p90
      %s92 = ssub.s32 %s32, %s39
      %p93 = scmp.eq.s32.totalorder %s92, 0
      %s95 = sadd.s32 %s94, 1
      %s96 = scalar_select %p93, %s94, %s95
      %p99 = pneg %p93
      %p100 = scmp.eq.s32.totalorder %s32, 1
      %p101 = por %p99, %p100
      %p102 = scmp.ne.s32.totalorder %s94, %s97
      %p103 = scmp.eq.s32.totalorder %s32, 0
      %p104 = por %p102, %p103
      %p105 = scmp.ne.s32.totalorder %s94, %s97
      %p106 = scmp.eq.s32.totalorder %s37, 1
      %p107 = por %p105, %p106
      %p108 = scmp.ne.s32.totalorder %s97, %s98
      %p109 = scmp.eq.s32.totalorder %s37, 0
      %p110 = por %p108, %p109
      %p111 = scmp.ne.s32.totalorder %s97, %s98
      %p112 = scmp.eq.s32.totalorder %s38, 1
      %p113 = por %p111, %p112
      %p115 = scmp.ne.s32.totalorder %s98, %s114
      %p116 = scmp.eq.s32.totalorder %s38, 0
      %p117 = por %p115, %p116
      %s119 = sadd.s32 %s118, 1
      %p122 = scmp.eq.s32.totalorder %s32, 1
      %p123 = scmp.ne.s32.totalorder %s118, %s120
      %p124 = scmp.eq.s32.totalorder %s32, 0
      %p125 = por %p123, %p124
      %p126 = scmp.ne.s32.totalorder %s118, %s120
      %p127 = scmp.eq.s32.totalorder %s37, 1
      %p128 = por %p126, %p127
      %p129 = scmp.ne.s32.totalorder %s120, %s121
      %p130 = scmp.eq.s32.totalorder %s37, 0
      %p131 = por %p129, %p130
      %p132 = scmp.ne.s32.totalorder %s120, %s121
      %p133 = scmp.eq.s32.totalorder %s38, 1
      %p134 = por %p132, %p133
      %p136 = scmp.ne.s32.totalorder %s121, %s135
      %p137 = scmp.eq.s32.totalorder %s38, 0
      %p138 = por %p136, %p137
      %s140 = sadd.s32 %s139, 1
      %p143 = scmp.eq.s32.totalorder %s32, 1
      %p144 = scmp.ne.s32.totalorder %s139, %s141
      %p145 = scmp.eq.s32.totalorder %s32, 0
      %p146 = por %p144, %p145
      %p147 = scmp.ne.s32.totalorder %s139, %s141
      %p148 = scmp.eq.s32.totalorder %s37, 1
      %p149 = por %p147, %p148
      %p150 = scmp.ne.s32.totalorder %s141, %s142
      %p151 = scmp.eq.s32.totalorder %s37, 0
      %p152 = por %p150, %p151
      %p153 = scmp.ne.s32.totalorder %s141, %s142
      %p154 = scmp.eq.s32.totalorder %s38, 1
      %p155 = por %p153, %p154
      %p157 = scmp.ne.s32.totalorder %s142, %s156
      %p158 = scmp.eq.s32.totalorder %s38, 0
      %p159 = por %p157, %p158
      %s161 = sadd.s32 %s160, 1
      %p164 = scmp.eq.s32.totalorder %s32, 1
      %p165 = scmp.ne.s32.totalorder %s160, %s162
      %p166 = scmp.eq.s32.totalorder %s32, 0
      %p167 = por %p165, %p166
      %p168 = scmp.ne.s32.totalorder %s160, %s162
      %p169 = scmp.eq.s32.totalorder %s37, 1
      %p170 = por %p168, %p169
      %p171 = scmp.ne.s32.totalorder %s162, %s163
      %p172 = scmp.eq.s32.totalorder %s37, 0
      %p173 = por %p171, %p172
      %p174 = scmp.ne.s32.totalorder %s162, %s163
      %p175 = scmp.eq.s32.totalorder %s38, 1
      %p176 = por %p174, %p175
      %p178 = scmp.ne.s32.totalorder %s163, %s177
      %p179 = scmp.eq.s32.totalorder %s38, 0
      %p180 = por %p178, %p179
      %s182 = sadd.s32 %s181, 1
      %p185 = scmp.eq.s32.totalorder %s32, 1
      %p186 = scmp.ne.s32.totalorder %s181, %s183
      %p187 = scmp.eq.s32.totalorder %s32, 0
      %p188 = por %p186, %p187
      %p189 = scmp.ne.s32.totalorder %s181, %s183
      %p190 = scmp.eq.s32.totalorder %s37, 1
      %p191 = por %p189, %p190
      %p192 = scmp.ne.s32.totalorder %s183, %s184
      %p193 = scmp.eq.s32.totalorder %s37, 0
      %p194 = por %p192, %p193
      %p195 = scmp.ne.s32.totalorder %s183, %s184
      %p196 = scmp.eq.s32.totalorder %s38, 1
      %p197 = por %p195, %p196
      %p199 = scmp.ne.s32.totalorder %s184, %s198
      %p200 = scmp.eq.s32.totalorder %s38, 0
      %p201 = por %p199, %p200
      %s203 = sadd.s32 %s202, 1
      %p206 = scmp.eq.s32.totalorder %s32, 1
      %p207 = scmp.ne.s32.totalorder %s202, %s204
      %p208 = scmp.eq.s32.totalorder %s32, 0
      %p209 = por %p207, %p208
      %p210 = scmp.ne.s32.totalorder %s202, %s204
      %p211 = scmp.eq.s32.totalorder %s37, 1
      %p212 = por %p210, %p211
      %p213 = scmp.ne.s32.totalorder %s204, %s205
      %p214 = scmp.eq.s32.totalorder %s37, 0
      %p215 = por %p213, %p214
      %p216 = scmp.ne.s32.totalorder %s204, %s205
      %p217 = scmp.eq.s32.totalorder %s38, 1
      %p218 = por %p216, %p217
      %p220 = scmp.ne.s32.totalorder %s205, %s219
      %p221 = scmp.eq.s32.totalorder %s38, 0
      %p222 = por %p220, %p221
      %s224 = sadd.s32 %s223, 1
      %p227 = scmp.eq.s32.totalorder %s32, 1
      %p228 = scmp.ne.s32.totalorder %s223, %s225
      %p229 = scmp.eq.s32.totalorder %s32, 0
      %p230 = por %p228, %p229
      %p231 = scmp.ne.s32.totalorder %s223, %s225
      %p232 = scmp.eq.s32.totalorder %s37, 1
      %p233 = por %p231, %p232
      %p234 = scmp.ne.s32.totalorder %s225, %s226
      %p235 = scmp.eq.s32.totalorder %s37, 0
      %p236 = por %p234, %p235
      %p237 = scmp.ne.s32.totalorder %s225, %s226
      %p238 = scmp.eq.s32.totalorder %s38, 1
      %p239 = por %p237, %p238
      %p241 = scmp.ne.s32.totalorder %s226, %s240
      %p242 = scmp.eq.s32.totalorder %s38, 0
      %p243 = por %p241, %p242
      %s245 = sadd.s32 %s244, 1
      %p248 = scmp.eq.s32.totalorder %s32, 1
      %p249 = scmp.ne.s32.totalorder %s244, %s246
      %p250 = scmp.eq.s32.totalorder %s32, 0
      %p251 = por %p249, %p250
      %p252 = scmp.ne.s32.totalorder %s244, %s246
      %p253 = scmp.eq.s32.totalorder %s37, 1
      %p254 = por %p252, %p253
      %p255 = scmp.ne.s32.totalorder %s246, %s247
      %p256 = scmp.eq.s32.totalorder %s37, 0
      %p257 = por %p255, %p256
      %p258 = scmp.ne.s32.totalorder %s246, %s247
      %p259 = scmp.eq.s32.totalorder %s38, 1
      %p260 = por %p258, %p259
      %p262 = scmp.ne.s32.totalorder %s247, %s261
      %p263 = scmp.eq.s32.totalorder %s38, 0
      %p264 = por %p262, %p263
      %s266 = sadd.s32 %s265, 1
      %p269 = scmp.eq.s32.totalorder %s32, 1
      %p270 = scmp.ne.s32.totalorder %s265, %s267
      %p271 = scmp.eq.s32.totalorder %s32, 0
      %p272 = por %p270, %p271
      %p273 = scmp.ne.s32.totalorder %s265, %s267
      %p274 = scmp.eq.s32.totalorder %s37, 1
      %p275 = por %p273, %p274
      %p276 = scmp.ne.s32.totalorder %s267, %s268
      %p277 = scmp.eq.s32.totalorder %s37, 0
      %p278 = por %p276, %p277
      %p279 = scmp.ne.s32.totalorder %s267, %s268
      %p280 = scmp.eq.s32.totalorder %s38, 1
      %p281 = por %p279, %p280
      %p283 = scmp.ne.s32.totalorder %s268, %s282
      %p284 = scmp.eq.s32.totalorder %s38, 0
      %p285 = por %p283, %p284
      %s287 = sadd.s32 %s286, 1
      %p290 = scmp.eq.s32.totalorder %s32, 1
      %p291 = scmp.ne.s32.totalorder %s286, %s288
      %p292 = scmp.eq.s32.totalorder %s32, 0
      %p293 = por %p291, %p292
      %p294 = scmp.ne.s32.totalorder %s286, %s288
      %p295 = scmp.eq.s32.totalorder %s37, 1
      %p296 = por %p294, %p295
      %p297 = scmp.ne.s32.totalorder %s288, %s289
      %p298 = scmp.eq.s32.totalorder %s37, 0
      %p299 = por %p297, %p298
      %p300 = scmp.ne.s32.totalorder %s288, %s289
      %p301 = scmp.eq.s32.totalorder %s38, 1
      %p302 = por %p300, %p301
      %p304 = scmp.ne.s32.totalorder %s289, %s303
      %p305 = scmp.eq.s32.totalorder %s38, 0
      %p306 = por %p304, %p305
      %s308 = sadd.s32 %s307, 1
      %p311 = scmp.eq.s32.totalorder %s32, 1
      %p312 = scmp.ne.s32.totalorder %s307, %s309
      %p313 = scmp.eq.s32.totalorder %s32, 0
      %p314 = por %p312, %p313
      %p315 = scmp.ne.s32.totalorder %s307, %s309
      %p316 = scmp.eq.s32.totalorder %s37, 1
      %p317 = por %p315, %p316
      %p318 = scmp.ne.s32.totalorder %s309, %s310
      %p319 = scmp.eq.s32.totalorder %s37, 0
      %p320 = por %p318, %p319
      %p321 = scmp.ne.s32.totalorder %s309, %s310
      %p322 = scmp.eq.s32.totalorder %s38, 1
      %p323 = por %p321, %p322
      %p325 = scmp.ne.s32.totalorder %s310, %s324
      %p326 = scmp.eq.s32.totalorder %s38, 0
      %p327 = por %p325, %p326
      %s329 = sadd.s32 %s328, 1
      %p332 = scmp.eq.s32.totalorder %s32, 1
      %p333 = scmp.ne.s32.totalorder %s328, %s330
      %p334 = scmp.eq.s32.totalorder %s32, 0
      %p335 = por %p333, %p334
      %p336 = scmp.ne.s32.totalorder %s328, %s330
      %p337 = scmp.eq.s32.totalorder %s37, 1
      %p338 = por %p336, %p337
      %p339 = scmp.ne.s32.totalorder %s330, %s331
      %p340 = scmp.eq.s32.totalorder %s37, 0
      %p341 = por %p339, %p340
      %p342 = scmp.ne.s32.totalorder %s330, %s331
      %p343 = scmp.eq.s32.totalorder %s38, 1
      %p344 = por %p342, %p343
      %p346 = scmp.ne.s32.totalorder %s331, %s345
      %p347 = scmp.eq.s32.totalorder %s38, 0
      %p348 = por %p346, %p347
      %s350 = sadd.s32 %s349, 1
      %p353 = scmp.eq.s32.totalorder %s32, 1
      %p354 = scmp.ne.s32.totalorder %s349, %s351
      %p355 = scmp.eq.s32.totalorder %s32, 0
      %p356 = por %p354, %p355
      %p357 = scmp.ne.s32.totalorder %s349, %s351
      %p358 = scmp.eq.s32.totalorder %s37, 1
      %p359 = por %p357, %p358
      %p360 = scmp.ne.s32.totalorder %s351, %s352
      %p361 = scmp.eq.s32.totalorder %s37, 0
      %p362 = por %p360, %p361
      %p363 = scmp.ne.s32.totalorder %s351, %s352
      %p364 = scmp.eq.s32.totalorder %s38, 1
      %p365 = por %p363, %p364
      %p367 = scmp.ne.s32.totalorder %s352, %s366
      %p368 = scmp.eq.s32.totalorder %s38, 0
      %p369 = por %p367, %p368
      %s370 = ssub.s32 %s32, %s39
      %p371 = scmp.eq.s32.totalorder %s370, 0
      %s373 = sadd.s32 %s372, 1
      %s374 = scalar_select %p371, %s372, %s373
      %p377 = pneg %p371
      %p378 = scmp.eq.s32.totalorder %s32, 1
      %p379 = por %p377, %p378
      %p380 = scmp.ne.s32.totalorder %s372, %s375
      %p381 = scmp.eq.s32.totalorder %s32, 0
      %p382 = por %p380, %p381
      %p383 = scmp.ne.s32.totalorder %s372, %s375
      %p384 = scmp.eq.s32.totalorder %s37, 1
      %p385 = por %p383, %p384
      %p386 = scmp.ne.s32.totalorder %s375, %s376
      %p387 = scmp.eq.s32.totalorder %s37, 0
      %p388 = por %p386, %p387
      %p389 = scmp.ne.s32.totalorder %s375, %s376
      %p390 = scmp.eq.s32.totalorder %s38, 1
      %p391 = por %p389, %p390
      %p393 = scmp.ne.s32.totalorder %s376, %s392
      %p394 = scmp.eq.s32.totalorder %s38, 0
      %p395 = por %p393, %p394
      %p396 = scmp.le.s32.totalorder 1, %s32
      %p397 = scmp.lt.s32.totalorder %s32, 3
      %p398 = pnand %p396, %p397
      %p399 = pneg %p398
      // Predicated region
      $region9: #{tpu_custom_call.1} parent=5 // pred_check
        _
      $region10: #{tpu_custom_call.1} parent=5 // pred_check_branch
        %401 = sbr.rel (%p398) target = $region12
      $region11: #{tpu_custom_call.1} parent=5 // pred_region
        %s402 = ssub.s32 %s32, 1
        // Predicated region
        $region13: #{tpu_custom_call.1} parent=11 // pred_check
          %p403 = pneg %p131
        $region14: #{tpu_custom_call.1} parent=11 // pred_check_branch
          %405 = sbr.rel (%p403) target = $region16
        $region15: #{tpu_custom_call.1} parent=11 // pred_region
          _
        $region16: #{tpu_custom_call.1} parent=11 // pred_fallthru
          _
        // Predicated region
        $region17: #{tpu_custom_call.1} parent=11 // pred_check
          %p406 = pneg %p152
        $region18: #{tpu_custom_call.1} parent=11 // pred_check_branch
          %408 = sbr.rel (%p406) target = $region20
        $region19: #{tpu_custom_call.1} parent=11 // pred_region
          _
        $region20: #{tpu_custom_call.1} parent=11 // pred_fallthru
          _
        // Predicated region
        $region21: #{tpu_custom_call.1} parent=11 // pred_check
          %p409 = pneg %p173
        $region22: #{tpu_custom_call.1} parent=11 // pred_check_branch
          %411 = sbr.rel (%p409) target = $region24
        $region23: #{tpu_custom_call.1} parent=11 // pred_region
          _
        $region24: #{tpu_custom_call.1} parent=11 // pred_fallthru
          _
        // Predicated region
        $region25: #{tpu_custom_call.1} parent=11 // pred_check
          %p412 = pneg %p194
        $region26: #{tpu_custom_call.1} parent=11 // pred_check_branch
          %414 = sbr.rel (%p412) target = $region28
        $region27: #{tpu_custom_call.1} parent=11 // pred_region
          _
        $region28: #{tpu_custom_call.1} parent=11 // pred_fallthru
          _
        // Predicated region
        $region29: #{tpu_custom_call.1} parent=11 // pred_check
          %p415 = pneg %p215
        $region30: #{tpu_custom_call.1} parent=11 // pred_check_branch
          %417 = sbr.rel (%p415) target = $region32
        $region31: #{tpu_custom_call.1} parent=11 // pred_region
          %419 = vsyncadd [#allocation9], 0
          %s420 = sshll.u32 %s7, 4
          %s421 = int_to_ptr.hbm [resolvable:$true] %s420
          %s422 = sshll.u32 [#allocation8], 4
          %s423 = int_to_ptr.vmem [resolvable:$true] %s422
          %428 = dma.hbm_to_vmem [thread:$0]  %s421, 2048, %s423, [#allocation9], 128, 128, 8
        $region32: #{tpu_custom_call.1} parent=11 // pred_fallthru
          _
        // Predicated region
        $region33: #{tpu_custom_call.1} parent=11 // pred_check
          %p429 = pneg %p236
        $region34: #{tpu_custom_call.1} parent=11 // pred_check_branch
          %431 = sbr.rel (%p429) target = $region36
        $region35: #{tpu_custom_call.1} parent=11 // pred_region
          %433 = vsyncadd [#allocation9], 0
          %s434 = sshll.u32 %s8, 4
          %s435 = int_to_ptr.hbm [resolvable:$true] %s434
          %s436 = sshll.u32 [#allocation10], 4
          %s437 = int_to_ptr.vmem [resolvable:$true] %s436
          %442 = dma.hbm_to_vmem [thread:$0]  %s435, 2048, %s437, [#allocation9], 128, 128, 8
        $region36: #{tpu_custom_call.1} parent=11 // pred_fallthru
          _
        // Predicated region
        $region37: #{tpu_custom_call.1} parent=11 // pred_check
          %p443 = pneg %p257
        $region38: #{tpu_custom_call.1} parent=11 // pred_check_branch
          %445 = sbr.rel (%p443) target = $region40
        $region39: #{tpu_custom_call.1} parent=11 // pred_region
          %447 = vsyncadd [#allocation12], 0
          %s448 = sshll.u32 %s9, 4
          %s449 = int_to_ptr.hbm [resolvable:$true] %s448
          %s450 = sshll.u32 [#allocation11], 4
          %s451 = int_to_ptr.vmem [resolvable:$true] %s450
          %456 = dma.hbm_to_vmem [thread:$0]  %s449, 2048, %s451, [#allocation12], 128, 128, 8
        $region40: #{tpu_custom_call.1} parent=11 // pred_fallthru
          _
        // Predicated region
        $region41: #{tpu_custom_call.1} parent=11 // pred_check
          %p457 = pneg %p278
        $region42: #{tpu_custom_call.1} parent=11 // pred_check_branch
          %459 = sbr.rel (%p457) target = $region44
        $region43: #{tpu_custom_call.1} parent=11 // pred_region
          %461 = vsyncadd [#allocation12], 0
          %s462 = sshll.u32 %s10, 4
          %s463 = int_to_ptr.hbm [resolvable:$true] %s462
          %s464 = sshll.u32 [#allocation13], 4
          %s465 = int_to_ptr.vmem [resolvable:$true] %s464
          %470 = dma.hbm_to_vmem [thread:$0]  %s463, 2048, %s465, [#allocation12], 128, 128, 8
        $region44: #{tpu_custom_call.1} parent=11 // pred_fallthru
          _
        // Predicated region
        $region45: #{tpu_custom_call.1} parent=11 // pred_check
          %p471 = pneg %p299
        $region46: #{tpu_custom_call.1} parent=11 // pred_check_branch
          %473 = sbr.rel (%p471) target = $region48
        $region47: #{tpu_custom_call.1} parent=11 // pred_region
          _
        $region48: #{tpu_custom_call.1} parent=11 // pred_fallthru
          _
        // Predicated region
        $region49: #{tpu_custom_call.1} parent=11 // pred_check
          %p474 = pneg %p320
        $region50: #{tpu_custom_call.1} parent=11 // pred_check_branch
          %476 = sbr.rel (%p474) target = $region52
        $region51: #{tpu_custom_call.1} parent=11 // pred_region
          _
        $region52: #{tpu_custom_call.1} parent=11 // pred_fallthru
          _
        // Predicated region
        $region53: #{tpu_custom_call.1} parent=11 // pred_check
          %p477 = pneg %p341
        $region54: #{tpu_custom_call.1} parent=11 // pred_check_branch
          %479 = sbr.rel (%p477) target = $region56
        $region55: #{tpu_custom_call.1} parent=11 // pred_region
          _
        $region56: #{tpu_custom_call.1} parent=11 // pred_fallthru
          _
        // Predicated region
        $region57: #{tpu_custom_call.1} parent=11 // pred_check
          %p480 = pneg %p362
        $region58: #{tpu_custom_call.1} parent=11 // pred_check_branch
          %482 = sbr.rel (%p480) target = $region60
        $region59: #{tpu_custom_call.1} parent=11 // pred_region
          _
        $region60: #{tpu_custom_call.1} parent=11 // pred_fallthru
          _
      $region12: #{tpu_custom_call.1} parent=5 // pred_fallthru
        _
      %p483 = scmp.lt.s32.totalorder %s32, 2
      // Predicated region
      $region61: #{tpu_custom_call.1} parent=5 // pred_check
        %p484 = pneg %p483
      $region62: #{tpu_custom_call.1} parent=5 // pred_check_branch
        %486 = sbr.rel (%p484) target = $region64
      $region63: #{tpu_custom_call.1} parent=5 // pred_region
        // Predicated region
        $region65: #{tpu_custom_call.1} parent=63 // pred_check
          %p487 = pneg %p52
        $region66: #{tpu_custom_call.1} parent=63 // pred_check_branch
          %489 = sbr.rel (%p487) target = $region68
        $region67: #{tpu_custom_call.1} parent=63 // pred_region
          %s490 = sand.u32 %s42, 1
          %s491 = scalar_lea.sflag [#allocation3], %s490
          %s492 = sand.u32 %s42, 1
          %s493 = smul.addr %s492, 16
          %s494 = scalar_lea.vmem [#allocation2], %s493
          %s495 = smul.u32 2, %s32
          %497 = vsyncadd %s491, 0
          %s498 = smul.addr %s495, 8
          %s499 = scalar_lea.hbm %s0, %s498
          %s500 = sshll.u32 %s499, 4
          %s501 = int_to_ptr.hbm [resolvable:$true] %s500
          %s502 = sshll.u32 %s494, 4
          %s503 = int_to_ptr.vmem [resolvable:$true] %s502
          %508 = dma.hbm_to_vmem [thread:$0]  %s501, 256, %s503, %s491, 128, 128, 8
        $region68: #{tpu_custom_call.1} parent=63 // pred_fallthru
          _
        // Predicated region
        $region69: #{tpu_custom_call.1} parent=63 // pred_check
          %p509 = pneg %p78
        $region70: #{tpu_custom_call.1} parent=63 // pred_check_branch
          %511 = sbr.rel (%p509) target = $region72
        $region71: #{tpu_custom_call.1} parent=63 // pred_region
          %s512 = sand.u32 %s32, 1
          %s513 = scalar_lea.sflag [#allocation6], %s512
          %s514 = sand.u32 %s68, 1
          %s515 = smul.addr %s514, 16
          %s516 = scalar_lea.vmem [#allocation5], %s515
          %s517 = smul.u32 2, %s32
          %519 = vsyncadd %s513, 0
          %s520 = smul.addr %s517, 8
          %s521 = scalar_lea.hbm %s1, %s520
          %s522 = sshll.u32 %s521, 4
          %s523 = int_to_ptr.hbm [resolvable:$true] %s522
          %s524 = sshll.u32 %s516, 4
          %s525 = int_to_ptr.vmem [resolvable:$true] %s524
          %530 = dma.hbm_to_vmem [thread:$0]  %s523, 256, %s525, %s513, 128, 128, 8
        $region72: #{tpu_custom_call.1} parent=63 // pred_fallthru
          _
        // Predicated region
        $region73: #{tpu_custom_call.1} parent=63 // pred_check
          %p531 = pneg %p104
        $region74: #{tpu_custom_call.1} parent=63 // pred_check_branch
          %533 = sbr.rel (%p531) target = $region76
        $region75: #{tpu_custom_call.1} parent=63 // pred_region
          %s534 = sand.u32 %s32, 1
          %s535 = scalar_lea.sflag [#allocation6], %s534
          %s536 = sand.u32 %s94, 1
          %s537 = smul.addr %s536, 16
          %s538 = scalar_lea.vmem [#allocation7], %s537
          %s539 = smul.u32 2, %s32
          %541 = vsyncadd %s535, 0
          %s542 = smul.addr %s539, 8
          %s543 = scalar_lea.hbm %s2, %s542
          %s544 = sshll.u32 %s543, 4
          %s545 = int_to_ptr.hbm [resolvable:$true] %s544
          %s546 = sshll.u32 %s538, 4
          %s547 = int_to_ptr.vmem [resolvable:$true] %s546
          %552 = dma.hbm_to_vmem [thread:$0]  %s545, 256, %s547, %s535, 128, 128, 8
        $region76: #{tpu_custom_call.1} parent=63 // pred_fallthru
          _
      $region64: #{tpu_custom_call.1} parent=5 // pred_fallthru
        _
      %p553 = scmp.le.s32.totalorder 1, %s32
      %p554 = scmp.lt.s32.totalorder %s32, 3
      %p555 = pnand %p553, %p554
      %p556 = pneg %p555
      // Predicated region
      $region77: #{tpu_custom_call.1} parent=5 // pred_check
        _
      $region78: #{tpu_custom_call.1} parent=5 // pred_check_branch
        %558 = sbr.rel (%p555) target = $region80
      $region79: #{tpu_custom_call.1} parent=5 // pred_region
        %s559 = ssub.s32 %s32, 1
        %s560 = sand.u32 %s45, 1
        %s561 = scalar_lea.sflag [#allocation3], %s560
        %s562 = sand.u32 %s45, 1
        %s563 = smul.addr %s562, 16
        %s564 = scalar_lea.vmem [#allocation2], %s563
        // Predicated region
        $region81: #{tpu_custom_call.1} parent=79 // pred_check
          %p565 = pneg %p58
        $region82: #{tpu_custom_call.1} parent=79 // pred_check_branch
          %567 = sbr.rel (%p565) target = $region84
        $region83: #{tpu_custom_call.1} parent=79 // pred_region
          %569 = dma.done %s561, 256
        $region84: #{tpu_custom_call.1} parent=79 // pred_fallthru
          _
        %s570 = sand.u32 %s37, 1
        %s571 = scalar_lea.sflag [#allocation6], %s570
        %s572 = sand.u32 %s71, 1
        %s573 = smul.addr %s572, 16
        %s574 = scalar_lea.vmem [#allocation5], %s573
        // Predicated region
        $region85: #{tpu_custom_call.1} parent=79 // pred_check
          %p575 = pneg %p84
        $region86: #{tpu_custom_call.1} parent=79 // pred_check_branch
          %577 = sbr.rel (%p575) target = $region88
        $region87: #{tpu_custom_call.1} parent=79 // pred_region
          %579 = dma.done %s571, 256
        $region88: #{tpu_custom_call.1} parent=79 // pred_fallthru
          _
        %s580 = sand.u32 %s37, 1
        %s581 = scalar_lea.sflag [#allocation6], %s580
        %s582 = sand.u32 %s97, 1
        %s583 = smul.addr %s582, 16
        %s584 = scalar_lea.vmem [#allocation7], %s583
        // Predicated region
        $region89: #{tpu_custom_call.1} parent=79 // pred_check
          %p585 = pneg %p110
        $region90: #{tpu_custom_call.1} parent=79 // pred_check_branch
          %587 = sbr.rel (%p585) target = $region92
        $region91: #{tpu_custom_call.1} parent=79 // pred_region
          %589 = dma.done %s581, 256
        $region92: #{tpu_custom_call.1} parent=79 // pred_fallthru
          _
        // Predicated region
        $region93: #{tpu_custom_call.1} parent=79 // pred_check
          %p590 = pneg %p215
        $region94: #{tpu_custom_call.1} parent=79 // pred_check_branch
          %592 = sbr.rel (%p590) target = $region96
        $region95: #{tpu_custom_call.1} parent=79 // pred_region
          %594 = dma.done [#allocation9], 2048
        $region96: #{tpu_custom_call.1} parent=79 // pred_fallthru
          _
        // Predicated region
        $region97: #{tpu_custom_call.1} parent=79 // pred_check
          %p595 = pneg %p236
        $region98: #{tpu_custom_call.1} parent=79 // pred_check_branch
          %597 = sbr.rel (%p595) target = $region100
        $region99: #{tpu_custom_call.1} parent=79 // pred_region
          %599 = dma.done [#allocation9], 2048
        $region100: #{tpu_custom_call.1} parent=79 // pred_fallthru
          _
        // Predicated region
        $region101: #{tpu_custom_call.1} parent=79 // pred_check
          %p600 = pneg %p257
        $region102: #{tpu_custom_call.1} parent=79 // pred_check_branch
          %602 = sbr.rel (%p600) target = $region104
        $region103: #{tpu_custom_call.1} parent=79 // pred_region
          %604 = dma.done [#allocation12], 2048
        $region104: #{tpu_custom_call.1} parent=79 // pred_fallthru
          _
        // Predicated region
        $region105: #{tpu_custom_call.1} parent=79 // pred_check
          %p605 = pneg %p278
        $region106: #{tpu_custom_call.1} parent=79 // pred_check_branch
          %607 = sbr.rel (%p605) target = $region108
        $region107: #{tpu_custom_call.1} parent=79 // pred_region
          %609 = dma.done [#allocation12], 2048
        $region108: #{tpu_custom_call.1} parent=79 // pred_fallthru
          _
        %s610 = sand.u32 %s45, 1
        %s611 = scalar_lea.sflag [#allocation3], %s610
        %s612 = sand.u32 %s45, 1
        %s613 = smul.addr %s612, 16
        %s614 = scalar_lea.vmem [#allocation2], %s613
        %p615 = pneg %p58
        %p616 = pneg %p55
        %s617 = sand.u32 %s37, 1
        %s618 = scalar_lea.sflag [#allocation6], %s617
        %s619 = sand.u32 %s71, 1
        %s620 = smul.addr %s619, 16
        %s621 = scalar_lea.vmem [#allocation5], %s620
        %p622 = pneg %p84
        %p623 = pneg %p81
        %s624 = sand.u32 %s37, 1
        %s625 = scalar_lea.sflag [#allocation6], %s624
        %s626 = sand.u32 %s97, 1
        %s627 = smul.addr %s626, 16
        %s628 = scalar_lea.vmem [#allocation7], %s627
        %p629 = pneg %p110
        %p630 = pneg %p107
        %p631 = pneg %p131
        %p632 = pneg %p128
        %p633 = pneg %p152
        %p634 = pneg %p149
        %p635 = pneg %p173
        %p636 = pneg %p170
        %p637 = pneg %p194
        %p638 = pneg %p191
        %p639 = pneg %p215
        %p640 = pneg %p212
        %p641 = pneg %p236
        %p642 = pneg %p233
        %p643 = pneg %p257
        %p644 = pneg %p254
        %p645 = pneg %p278
        %p646 = pneg %p275
        %p647 = pneg %p299
        %p648 = pneg %p296
        %p649 = pneg %p320
        %p650 = pneg %p317
        %p651 = pneg %p341
        %p652 = pneg %p338
        %p653 = pneg %p362
        %p654 = pneg %p359
        %p655 = pneg %p388
        %p656 = pneg %p385
        %s657 = sand.u32 %s375, 1
        %s658 = scalar_lea.sflag [#allocation4], %s657
        %s659 = sand.u32 %s375, 1
        %s660 = smul.addr %s659, 16
        %s661 = scalar_lea.vmem [#allocation14], %s660
        %s662 = smul.u32 2, %s37
        %s663 = smul.u32 2, %s37
        %s664 = smul.u32 2, %s37
        %s665 = smul.u32 2, %s37
        %v666 = vld [vmem:[%s3] sm:$0x1]
        %v667 = vld [vmem:[%s4] sm:$0x1]
        %v668 = vld [vmem:[%s564] sm:$0xff]
        %v669 = vld [vmem:[%s564 + $0x8] sm:$0xff]
        %670 = vadd.xlane.f32.xlu0 %v668
        %v671 = vpop.xlane.xlu0 %670
        %672 = vadd.xlane.f32.xlu0 %v669
        %v673 = vpop.xlane.xlu0 %672
        %v674 = vrcp.pop 128.0
        %v675 = vmul.f32 128.0, %v674
        %v676 = vsub.f32 1.0, %v675
        %v677 = vmul.f32 %v674, %v676
        %v678 = vadd.f32 %v674, %v677
        %vm679 = vweird.f32 %v674
        %v680 = vsel %vm679, %v674, %v678
        %v681 = vmul.f32 %v671, %v680
        %v682 = vmul.f32 %v673, %v680
        %v683 = vsub.f32 %v668, %v681
        %v684 = vsub.f32 %v669, %v682
        %v685 = vmul.f32 %v683, %v683
        %v686 = vmul.f32 %v684, %v684
        %687 = vadd.xlane.f32.xlu0 %v685
        %v688 = vpop.xlane.xlu0 %687
        %689 = vadd.xlane.f32.xlu0 %v686
        %v690 = vpop.xlane.xlu0 %689
        %v691 = vmul.f32 %v688, %v680
        %v692 = vmul.f32 %v690, %v680
        %v693 = vadd.f32 %v691, 1e-05
        %v694 = vadd.f32 %v692, 1e-05
        %v695 = vrsqrt.pop %v693
        %v696 = vmul.f32 %v695, %v693
        %v697 = vmul.f32 %v696, %v695
        %v698 = vmul.f32 0.5, %v697
        %v699 = vsub.f32 1.5, %v698
        %v700 = vmul.f32 %v695, %v699
        %vm701 = vweird.f32 %v693
        %vm702 = vweird.f32 %v695
        %vm703 = vmor %vm701, %vm702
        %v704 = vsel %vm703, %v695, %v700
        %v705 = vrsqrt.pop %v694
        %v706 = vmul.f32 %v705, %v694
        %v707 = vmul.f32 %v706, %v705
        %v708 = vmul.f32 0.5, %v707
        %v709 = vsub.f32 1.5, %v708
        %v710 = vmul.f32 %v705, %v709
        %vm711 = vweird.f32 %v694
        %vm712 = vweird.f32 %v705
        %vm713 = vmor %vm711, %vm712
        %v714 = vsel %vm713, %v705, %v710
        %v715 = vmul.f32 %v683, %v704
        %v716 = vmul.f32 %v684, %v714
        %v718 = vperm.slane %v666, 0
        %v720 = vmul.f32 %v715, %v718
        %v721 = vmul.f32 %v716, %v718
        %v723 = vperm.slane %v667, 0
        %v725 = vadd.f32 %v720, %v723
        %v726 = vadd.f32 %v721, %v723
        %v727 = vld [vmem:[%s574] sm:$0xff]
        %v728 = vld [vmem:[%s574 + $0x8] sm:$0xff]
        %729 = vadd.xlane.f32.xlu0 %v727
        %v730 = vpop.xlane.xlu0 %729
        %731 = vadd.xlane.f32.xlu0 %v728
        %v732 = vpop.xlane.xlu0 %731
        %v733 = vmul.f32 %v730, %v680
        %v734 = vmul.f32 %v732, %v680
        %v735 = vsub.f32 %v727, %v733
        %v736 = vsub.f32 %v728, %v734
        %v737 = vmul.f32 %v735, %v735
        %v738 = vmul.f32 %v736, %v736
        %739 = vadd.xlane.f32.xlu0 %v737
        %v740 = vpop.xlane.xlu0 %739
        %741 = vadd.xlane.f32.xlu0 %v738
        %v742 = vpop.xlane.xlu0 %741
        %v743 = vmul.f32 %v740, %v680
        %v744 = vmul.f32 %v742, %v680
        %v745 = vadd.f32 %v743, 1e-05
        %v746 = vadd.f32 %v744, 1e-05
        %v747 = vrsqrt.pop %v745
        %v748 = vmul.f32 %v747, %v745
        %v749 = vmul.f32 %v748, %v747
        %v750 = vmul.f32 0.5, %v749
        %v751 = vsub.f32 1.5, %v750
        %v752 = vmul.f32 %v747, %v751
        %vm753 = vweird.f32 %v745
        %vm754 = vweird.f32 %v747
        %vm755 = vmor %vm753, %vm754
        %v756 = vsel %vm755, %v747, %v752
        %v757 = vrsqrt.pop %v746
        %v758 = vmul.f32 %v757, %v746
        %v759 = vmul.f32 %v758, %v757
        %v760 = vmul.f32 0.5, %v759
        %v761 = vsub.f32 1.5, %v760
        %v762 = vmul.f32 %v757, %v761
        %vm763 = vweird.f32 %v746
        %vm764 = vweird.f32 %v757
        %vm765 = vmor %vm763, %vm764
        %v766 = vsel %vm765, %v757, %v762
        %v767 = vmul.f32 %v735, %v756
        %v768 = vmul.f32 %v736, %v766
        %v769 = vmul.f32 %v767, %v718
        %v770 = vmul.f32 %v768, %v718
        %v771 = vadd.f32 %v769, %v723
        %v772 = vadd.f32 %v770, %v723
        %v773 = vld [vmem:[%s584] sm:$0xff]
        %v774 = vld [vmem:[%s584 + $0x8] sm:$0xff]
        %775 = vadd.xlane.f32.xlu0 %v773
        %v776 = vpop.xlane.xlu0 %775
        %777 = vadd.xlane.f32.xlu0 %v774
        %v778 = vpop.xlane.xlu0 %777
        %v779 = vmul.f32 %v776, %v680
        %v780 = vmul.f32 %v778, %v680
        %v781 = vsub.f32 %v773, %v779
        %v782 = vsub.f32 %v774, %v780
        %v783 = vmul.f32 %v781, %v781
        %v784 = vmul.f32 %v782, %v782
        %785 = vadd.xlane.f32.xlu0 %v783
        %v786 = vpop.xlane.xlu0 %785
        %787 = vadd.xlane.f32.xlu0 %v784
        %v788 = vpop.xlane.xlu0 %787
        %v789 = vmul.f32 %v786, %v680
        %v790 = vmul.f32 %v788, %v680
        %v791 = vadd.f32 %v789, 1e-05
        %v792 = vadd.f32 %v790, 1e-05
        %v793 = vrsqrt.pop %v791
        %v794 = vmul.f32 %v793, %v791
        %v795 = vmul.f32 %v794, %v793
        %v796 = vmul.f32 0.5, %v795
        %v797 = vsub.f32 1.5, %v796
        %v798 = vmul.f32 %v793, %v797
        %vm799 = vweird.f32 %v791
        %vm800 = vweird.f32 %v793
        %vm801 = vmor %vm799, %vm800
        %v802 = vsel %vm801, %v793, %v798
        %v803 = vrsqrt.pop %v792
        %v804 = vmul.f32 %v803, %v792
        %v805 = vmul.f32 %v804, %v803
        %v806 = vmul.f32 0.5, %v805
        %v807 = vsub.f32 1.5, %v806
        %v808 = vmul.f32 %v803, %v807
        %vm809 = vweird.f32 %v792
        %vm810 = vweird.f32 %v803
        %vm811 = vmor %vm809, %vm810
        %v812 = vsel %vm811, %v803, %v808
        %v813 = vmul.f32 %v781, %v802
        %v814 = vmul.f32 %v782, %v812
        %v815 = vmul.f32 %v813, %v718
        %v816 = vmul.f32 %v814, %v718
        %v817 = vadd.f32 %v815, %v723
        %v818 = vadd.f32 %v816, %v723
        %v819 = vld [vmem:[#allocation8] sm:$0xff]
        %v820 = vld [vmem:[#allocation8 + $0x8] sm:$0xff]
        %v821 = vld [vmem:[#allocation8 + $0x10] sm:$0xff]
        %v822 = vld [vmem:[#allocation8 + $0x18] sm:$0xff]
        %v823 = vld [vmem:[#allocation8 + $0x20] sm:$0xff]
        %v824 = vld [vmem:[#allocation8 + $0x28] sm:$0xff]
        %v825 = vld [vmem:[#allocation8 + $0x30] sm:$0xff]
        %v826 = vld [vmem:[#allocation8 + $0x38] sm:$0xff]
        %v827 = vld [vmem:[#allocation8 + $0x40] sm:$0xff]
        %v828 = vld [vmem:[#allocation8 + $0x48] sm:$0xff]
        %v829 = vld [vmem:[#allocation8 + $0x50] sm:$0xff]
        %v830 = vld [vmem:[#allocation8 + $0x58] sm:$0xff]
        %v831 = vld [vmem:[#allocation8 + $0x60] sm:$0xff]
        %v832 = vld [vmem:[#allocation8 + $0x68] sm:$0xff]
        %v833 = vld [vmem:[#allocation8 + $0x70] sm:$0xff]
        %v834 = vld [vmem:[#allocation8 + $0x78] sm:$0xff]
        %v835 = vld [vmem:[%s11] sm:$0x1]
        %v837 = vperm.slane %v835, 0
        %839 = vmatpush.msra.mxu0 %v834
        %840 = vmatpush.msra.mxu0 %v833
        %841 = vmatpush.msra.mxu0 %v832
        %842 = vmatpush.msra.mxu0 %v831
        %843 = vmatpush.msra.mxu0 %v830
        %844 = vmatpush.msra.mxu0 %v829
        %845 = vmatpush.msra.mxu0 %v828
        %846 = vmatpush.msra.mxu0 %v827
        %847 = vmatpush.msra.mxu0 %v826
        %848 = vmatpush.msra.mxu0 %v825
        %849 = vmatpush.msra.mxu0 %v824
        %850 = vmatpush.msra.mxu0 %v823
        %851 = vmatpush.msra.mxu0 %v822
        %852 = vmatpush.msra.mxu0 %v821
        %853 = vmatpush.msra.mxu0 %v820
        %854 = vmatpush.msra.mxu0 %v819
        %855 = vmatmul.f32.gmra.mxu0 %v725
        %v856 = vpop.f32.mrf.mxu0
        %v857 = vadd.f32 %v837, %v856
        %858 = vmatmul.f32.gmra.mxu0 %v726
        %v859 = vpop.f32.mrf.mxu0
        %v860 = vadd.f32 %v837, %v859
        %861 = vdwg.mxu0
        %v862 = vld [vmem:[#allocation10] sm:$0xff]
        %v863 = vld [vmem:[#allocation10 + $0x8] sm:$0xff]
        %v864 = vld [vmem:[#allocation10 + $0x10] sm:$0xff]
        %v865 = vld [vmem:[#allocation10 + $0x18] sm:$0xff]
        %v866 = vld [vmem:[#allocation10 + $0x20] sm:$0xff]
        %v867 = vld [vmem:[#allocation10 + $0x28] sm:$0xff]
        %v868 = vld [vmem:[#allocation10 + $0x30] sm:$0xff]
        %v869 = vld [vmem:[#allocation10 + $0x38] sm:$0xff]
        %v870 = vld [vmem:[#allocation10 + $0x40] sm:$0xff]
        %v871 = vld [vmem:[#allocation10 + $0x48] sm:$0xff]
        %v872 = vld [vmem:[#allocation10 + $0x50] sm:$0xff]
        %v873 = vld [vmem:[#allocation10 + $0x58] sm:$0xff]
        %v874 = vld [vmem:[#allocation10 + $0x60] sm:$0xff]
        %v875 = vld [vmem:[#allocation10 + $0x68] sm:$0xff]
        %v876 = vld [vmem:[#allocation10 + $0x70] sm:$0xff]
        %v877 = vld [vmem:[#allocation10 + $0x78] sm:$0xff]
        %v878 = vld [vmem:[%s12] sm:$0x1]
        %v880 = vperm.slane %v878, 0
        %882 = vmatpush.msra.mxu0 %v877
        %883 = vmatpush.msra.mxu0 %v876
        %884 = vmatpush.msra.mxu0 %v875
        %885 = vmatpush.msra.mxu0 %v874
        %886 = vmatpush.msra.mxu0 %v873
        %887 = vmatpush.msra.mxu0 %v872
        %888 = vmatpush.msra.mxu0 %v871
        %889 = vmatpush.msra.mxu0 %v870
        %890 = vmatpush.msra.mxu0 %v869
        %891 = vmatpush.msra.mxu0 %v868
        %892 = vmatpush.msra.mxu0 %v867
        %893 = vmatpush.msra.mxu0 %v866
        %894 = vmatpush.msra.mxu0 %v865
        %895 = vmatpush.msra.mxu0 %v864
        %896 = vmatpush.msra.mxu0 %v863
        %897 = vmatpush.msra.mxu0 %v862
        %898 = vmatmul.f32.gmra.mxu0 %v771
        %v899 = vpop.f32.mrf.mxu0
        %v900 = vadd.f32 %v880, %v899
        %901 = vmatmul.f32.gmra.mxu0 %v772
        %v902 = vpop.f32.mrf.mxu0
        %v903 = vadd.f32 %v880, %v902
        %904 = vdwg.mxu0
        %v905 = vld [vmem:[#allocation11] sm:$0xff]
        %v906 = vld [vmem:[#allocation11 + $0x8] sm:$0xff]
        %v907 = vld [vmem:[#allocation11 + $0x10] sm:$0xff]
        %v908 = vld [vmem:[#allocation11 + $0x18] sm:$0xff]
        %v909 = vld [vmem:[#allocation11 + $0x20] sm:$0xff]
        %v910 = vld [vmem:[#allocation11 + $0x28] sm:$0xff]
        %v911 = vld [vmem:[#allocation11 + $0x30] sm:$0xff]
        %v912 = vld [vmem:[#allocation11 + $0x38] sm:$0xff]
        %v913 = vld [vmem:[#allocation11 + $0x40] sm:$0xff]
        %v914 = vld [vmem:[#allocation11 + $0x48] sm:$0xff]
        %v915 = vld [vmem:[#allocation11 + $0x50] sm:$0xff]
        %v916 = vld [vmem:[#allocation11 + $0x58] sm:$0xff]
        %v917 = vld [vmem:[#allocation11 + $0x60] sm:$0xff]
        %v918 = vld [vmem:[#allocation11 + $0x68] sm:$0xff]
        %v919 = vld [vmem:[#allocation11 + $0x70] sm:$0xff]
        %v920 = vld [vmem:[#allocation11 + $0x78] sm:$0xff]
        %v921 = vld [vmem:[%s13] sm:$0x1]
        %v923 = vperm.slane %v921, 0
        %925 = vmatpush.msra.mxu0 %v920
        %926 = vmatpush.msra.mxu0 %v919
        %927 = vmatpush.msra.mxu0 %v918
        %928 = vmatpush.msra.mxu0 %v917
        %929 = vmatpush.msra.mxu0 %v916
        %930 = vmatpush.msra.mxu0 %v915
        %931 = vmatpush.msra.mxu0 %v914
        %932 = vmatpush.msra.mxu0 %v913
        %933 = vmatpush.msra.mxu0 %v912
        %934 = vmatpush.msra.mxu0 %v911
        %935 = vmatpush.msra.mxu0 %v910
        %936 = vmatpush.msra.mxu0 %v909
        %937 = vmatpush.msra.mxu0 %v908
        %938 = vmatpush.msra.mxu0 %v907
        %939 = vmatpush.msra.mxu0 %v906
        %940 = vmatpush.msra.mxu0 %v905
        %941 = vmatmul.f32.gmra.mxu0 %v817
        %v942 = vpop.f32.mrf.mxu0
        %v943 = vadd.f32 %v923, %v942
        %944 = vmatmul.f32.gmra.mxu0 %v818
        %v945 = vpop.f32.mrf.mxu0
        %v946 = vadd.f32 %v923, %v945
        %947 = vdwg.mxu0
        %vm948 = vcmask 261120
        %v950 = vsel %vm948, %v857, 0
        %v953 = vsel %vm948, %v900, 0
        %955 = vmatpush.xpose.msra.mxu0 0.0
        %956 = vmatpush.xpose.msra.mxu0 0.0
        %957 = vmatpush.xpose.msra.mxu0 0.0
        %958 = vmatpush.xpose.msra.mxu0 0.0
        %959 = vmatpush.xpose.msra.mxu0 0.0
        %960 = vmatpush.xpose.msra.mxu0 0.0
        %961 = vmatpush.xpose.msra.mxu0 0.0
        %962 = vmatpush.xpose.msra.mxu0 0.0
        %963 = vmatpush.xpose.msra.mxu0 0.0
        %964 = vmatpush.xpose.msra.mxu0 0.0
        %965 = vmatpush.xpose.msra.mxu0 0.0
        %966 = vmatpush.xpose.msra.mxu0 0.0
        %967 = vmatpush.xpose.msra.mxu0 0.0
        %968 = vmatpush.xpose.msra.mxu0 0.0
        %969 = vmatpush.xpose.msra.mxu0 0.0
        %970 = vmatpush.xpose.msra.mxu0 %v953
        %971 = vmatmul.f32.gmra.mxu0 %v950
        %v972 = vpop.f32.mrf.mxu0
        %v973 = vadd.f32 0.0, %v972
        %974 = vdwg.mxu0
        %v976 = vsel %vm948, %v860, 0
        %v979 = vsel %vm948, %v903, 0
        %981 = vmatpush.xpose.msra.mxu0 0.0
        %982 = vmatpush.xpose.msra.mxu0 0.0
        %983 = vmatpush.xpose.msra.mxu0 0.0
        %984 = vmatpush.xpose.msra.mxu0 0.0
        %985 = vmatpush.xpose.msra.mxu0 0.0
        %986 = vmatpush.xpose.msra.mxu0 0.0
        %987 = vmatpush.xpose.msra.mxu0 0.0
        %988 = vmatpush.xpose.msra.mxu0 0.0
        %989 = vmatpush.xpose.msra.mxu0 0.0
        %990 = vmatpush.xpose.msra.mxu0 0.0
        %991 = vmatpush.xpose.msra.mxu0 0.0
        %992 = vmatpush.xpose.msra.mxu0 0.0
        %993 = vmatpush.xpose.msra.mxu0 0.0
        %994 = vmatpush.xpose.msra.mxu0 0.0
        %995 = vmatpush.xpose.msra.mxu0 0.0
        %996 = vmatpush.xpose.msra.mxu0 %v979
        %997 = vmatmul.f32.gmra.mxu0 %v976
        %v998 = vpop.f32.mrf.mxu0
        %v999 = vadd.f32 0.0, %v998
        %1000 = vdwg.mxu0
        %vm1001 = vcmask 64512
        %v1002 = vsel %vm1001, %v973, -inf
        %1003 = vmax.xlane.f32.xlu0 %v1002
        %v1004 = vpop.xlane.xlu0 %1003
        %v1005 = vsel %vm1001, %v999, -inf
        %1006 = vmax.xlane.f32.xlu0 %v1005
        %v1007 = vpop.xlane.xlu0 %1006
        %v1008 = vsub.f32 %v973, %v1004
        %v1009 = vsub.f32 %v999, %v1007
        %v1010 = vmul.f32 %v1008, 1.442695
        %v1011 = vpow.pop %v1010
        %v1012 = vmul.f32 %v1009, 1.442695
        %v1013 = vpow.pop %v1012
        %v1014 = vsel %vm1001, %v1011, 0.0
        %1015 = vadd.xlane.f32.xlu0 %v1014
        %v1016 = vpop.xlane.xlu0 %1015
        %v1017 = vsel %vm1001, %v1013, 0.0
        %1018 = vadd.xlane.f32.xlu0 %v1017
        %v1019 = vpop.xlane.xlu0 %1018
        %v1021 = vsel %vm1001, %v1011, 0
        %1023 = vmatpush.msra.mxu0 0.0
        %1024 = vmatpush.msra.mxu0 0.0
        %1025 = vmatpush.msra.mxu0 0.0
        %1026 = vmatpush.msra.mxu0 0.0
        %1027 = vmatpush.msra.mxu0 0.0
        %1028 = vmatpush.msra.mxu0 0.0
        %1029 = vmatpush.msra.mxu0 0.0
        %1030 = vmatpush.msra.mxu0 0.0
        %1031 = vmatpush.msra.mxu0 0.0
        %1032 = vmatpush.msra.mxu0 0.0
        %1033 = vmatpush.msra.mxu0 0.0
        %1034 = vmatpush.msra.mxu0 0.0
        %1035 = vmatpush.msra.mxu0 0.0
        %1036 = vmatpush.msra.mxu0 0.0
        %1037 = vmatpush.msra.mxu0 0.0
        %1038 = vmatpush.msra.mxu0 %v943
        %1039 = vmatmul.f32.gmra.mxu0 %v1021
        %v1040 = vpop.f32.mrf.mxu0
        %v1041 = vadd.f32 0.0, %v1040
        %1042 = vdwg.mxu0
        %v1044 = vsel %vm1001, %v1013, 0
        %1046 = vmatpush.msra.mxu0 0.0
        %1047 = vmatpush.msra.mxu0 0.0
        %1048 = vmatpush.msra.mxu0 0.0
        %1049 = vmatpush.msra.mxu0 0.0
        %1050 = vmatpush.msra.mxu0 0.0
        %1051 = vmatpush.msra.mxu0 0.0
        %1052 = vmatpush.msra.mxu0 0.0
        %1053 = vmatpush.msra.mxu0 0.0
        %1054 = vmatpush.msra.mxu0 0.0
        %1055 = vmatpush.msra.mxu0 0.0
        %1056 = vmatpush.msra.mxu0 0.0
        %1057 = vmatpush.msra.mxu0 0.0
        %1058 = vmatpush.msra.mxu0 0.0
        %1059 = vmatpush.msra.mxu0 0.0
        %1060 = vmatpush.msra.mxu0 0.0
        %1061 = vmatpush.msra.mxu0 %v946
        %1062 = vmatmul.f32.gmra.mxu0 %v1044
        %v1063 = vpop.f32.mrf.mxu0
        %v1064 = vadd.f32 0.0, %v1063
        %1065 = vdwg.mxu0
        %v1066 = vrcp.pop %v1016
        %v1067 = vrcp.pop %v1019
        %v1068 = vmul.f32 %v1041, %v1066
        %v1069 = vmul.f32 %v1064, %v1067
        %1070 = vrot.lane.b32.xlu0 %v857, 96
        %v1071 = vpop.permute.xlu0 %1070
        %1072 = vrot.lane.b32.xlu0 %v900, 96
        %v1073 = vpop.permute.xlu0 %1072
        %v1074 = vsel %vm948, %v1071, 0
        %v1076 = vsel %vm948, %v1073, 0
        %1078 = vmatpush.xpose.msra.mxu0 0.0
        %1079 = vmatpush.xpose.msra.mxu0 0.0
        %1080 = vmatpush.xpose.msra.mxu0 0.0
        %1081 = vmatpush.xpose.msra.mxu0 0.0
        %1082 = vmatpush.xpose.msra.mxu0 0.0
        %1083 = vmatpush.xpose.msra.mxu0 0.0
        %1084 = vmatpush.xpose.msra.mxu0 0.0
        %1085 = vmatpush.xpose.msra.mxu0 0.0
        %1086 = vmatpush.xpose.msra.mxu0 0.0
        %1087 = vmatpush.xpose.msra.mxu0 0.0
        %1088 = vmatpush.xpose.msra.mxu0 0.0
        %1089 = vmatpush.xpose.msra.mxu0 0.0
        %1090 = vmatpush.xpose.msra.mxu0 0.0
        %1091 = vmatpush.xpose.msra.mxu0 0.0
        %1092 = vmatpush.xpose.msra.mxu0 0.0
        %1093 = vmatpush.xpose.msra.mxu0 %v1076
        %1094 = vmatmul.f32.gmra.mxu0 %v1074
        %v1095 = vpop.f32.mrf.mxu0
        %v1096 = vadd.f32 0.0, %v1095
        %1097 = vdwg.mxu0
        %1098 = vrot.lane.b32.xlu0 %v860, 96
        %v1099 = vpop.permute.xlu0 %1098
        %1100 = vrot.lane.b32.xlu0 %v903, 96
        %v1101 = vpop.permute.xlu0 %1100
        %v1102 = vsel %vm948, %v1099, 0
        %v1104 = vsel %vm948, %v1101, 0
        %1106 = vmatpush.xpose.msra.mxu0 0.0
        %1107 = vmatpush.xpose.msra.mxu0 0.0
        %1108 = vmatpush.xpose.msra.mxu0 0.0
        %1109 = vmatpush.xpose.msra.mxu0 0.0
        %1110 = vmatpush.xpose.msra.mxu0 0.0
        %1111 = vmatpush.xpose.msra.mxu0 0.0
        %1112 = vmatpush.xpose.msra.mxu0 0.0
        %1113 = vmatpush.xpose.msra.mxu0 0.0
        %1114 = vmatpush.xpose.msra.mxu0 0.0
        %1115 = vmatpush.xpose.msra.mxu0 0.0
        %1116 = vmatpush.xpose.msra.mxu0 0.0
        %1117 = vmatpush.xpose.msra.mxu0 0.0
        %1118 = vmatpush.xpose.msra.mxu0 0.0
        %1119 = vmatpush.xpose.msra.mxu0 0.0
        %1120 = vmatpush.xpose.msra.mxu0 0.0
        %1121 = vmatpush.xpose.msra.mxu0 %v1104
        %1122 = vmatmul.f32.gmra.mxu0 %v1102
        %v1123 = vpop.f32.mrf.mxu0
        %v1124 = vadd.f32 0.0, %v1123
        %1125 = vdwg.mxu0
        %v1126 = vsel %vm1001, %v1096, -inf
        %1127 = vmax.xlane.f32.xlu0 %v1126
        %v1128 = vpop.xlane.xlu0 %1127
        %v1129 = vsel %vm1001, %v1124, -inf
        %1130 = vmax.xlane.f32.xlu0 %v1129
        %v1131 = vpop.xlane.xlu0 %1130
        %v1132 = vsub.f32 %v1096, %v1128
        %v1133 = vsub.f32 %v1124, %v1131
        %v1134 = vmul.f32 %v1132, 1.442695
        %v1135 = vpow.pop %v1134
        %v1136 = vmul.f32 %v1133, 1.442695
        %v1137 = vpow.pop %v1136
        %v1138 = vsel %vm1001, %v1135, 0.0
        %1139 = vadd.xlane.f32.xlu0 %v1138
        %v1140 = vpop.xlane.xlu0 %1139
        %v1141 = vsel %vm1001, %v1137, 0.0
        %1142 = vadd.xlane.f32.xlu0 %v1141
        %v1143 = vpop.xlane.xlu0 %1142
        %1145 = vrot.lane.b32.xlu0 %v943, 96
        %v1146 = vpop.permute.xlu0 %1145
        %v1149 = vsel %vm1001, %v1135, 0
        %1151 = vmatpush.msra.mxu0 0.0
        %1152 = vmatpush.msra.mxu0 0.0
        %1153 = vmatpush.msra.mxu0 0.0
        %1154 = vmatpush.msra.mxu0 0.0
        %1155 = vmatpush.msra.mxu0 0.0
        %1156 = vmatpush.msra.mxu0 0.0
        %1157 = vmatpush.msra.mxu0 0.0
        %1158 = vmatpush.msra.mxu0 0.0
        %1159 = vmatpush.msra.mxu0 0.0
        %1160 = vmatpush.msra.mxu0 0.0
        %1161 = vmatpush.msra.mxu0 0.0
        %1162 = vmatpush.msra.mxu0 0.0
        %1163 = vmatpush.msra.mxu0 0.0
        %1164 = vmatpush.msra.mxu0 0.0
        %1165 = vmatpush.msra.mxu0 0.0
        %1166 = vmatpush.msra.mxu0 %v1146
        %1167 = vmatmul.f32.gmra.mxu0 %v1149
        %v1168 = vpop.f32.mrf.mxu0
        %v1169 = vadd.f32 0.0, %v1168
        %1170 = vdwg.mxu0
        %1172 = vrot.lane.b32.xlu0 %v946, 96
        %v1173 = vpop.permute.xlu0 %1172
        %v1176 = vsel %vm1001, %v1137, 0
        %1178 = vmatpush.msra.mxu0 0.0
        %1179 = vmatpush.msra.mxu0 0.0
        %1180 = vmatpush.msra.mxu0 0.0
        %1181 = vmatpush.msra.mxu0 0.0
        %1182 = vmatpush.msra.mxu0 0.0
        %1183 = vmatpush.msra.mxu0 0.0
        %1184 = vmatpush.msra.mxu0 0.0
        %1185 = vmatpush.msra.mxu0 0.0
        %1186 = vmatpush.msra.mxu0 0.0
        %1187 = vmatpush.msra.mxu0 0.0
        %1188 = vmatpush.msra.mxu0 0.0
        %1189 = vmatpush.msra.mxu0 0.0
        %1190 = vmatpush.msra.mxu0 0.0
        %1191 = vmatpush.msra.mxu0 0.0
        %1192 = vmatpush.msra.mxu0 0.0
        %1193 = vmatpush.msra.mxu0 %v1173
        %1194 = vmatmul.f32.gmra.mxu0 %v1176
        %v1195 = vpop.f32.mrf.mxu0
        %v1196 = vadd.f32 0.0, %v1195
        %1197 = vdwg.mxu0
        %v1198 = vrcp.pop %v1140
        %v1199 = vrcp.pop %v1143
        %v1200 = vmul.f32 %v1169, %v1198
        %v1201 = vmul.f32 %v1196, %v1199
        %1202 = vrot.lane.b32.xlu0 %v857, 64
        %v1203 = vpop.permute.xlu0 %1202
        %1204 = vrot.lane.b32.xlu0 %v900, 64
        %v1205 = vpop.permute.xlu0 %1204
        %v1206 = vsel %vm948, %v1203, 0
        %v1208 = vsel %vm948, %v1205, 0
        %1210 = vmatpush.xpose.msra.mxu0 0.0
        %1211 = vmatpush.xpose.msra.mxu0 0.0
        %1212 = vmatpush.xpose.msra.mxu0 0.0
        %1213 = vmatpush.xpose.msra.mxu0 0.0
        %1214 = vmatpush.xpose.msra.mxu0 0.0
        %1215 = vmatpush.xpose.msra.mxu0 0.0
        %1216 = vmatpush.xpose.msra.mxu0 0.0
        %1217 = vmatpush.xpose.msra.mxu0 0.0
        %1218 = vmatpush.xpose.msra.mxu0 0.0
        %1219 = vmatpush.xpose.msra.mxu0 0.0
        %1220 = vmatpush.xpose.msra.mxu0 0.0
        %1221 = vmatpush.xpose.msra.mxu0 0.0
        %1222 = vmatpush.xpose.msra.mxu0 0.0
        %1223 = vmatpush.xpose.msra.mxu0 0.0
        %1224 = vmatpush.xpose.msra.mxu0 0.0
        %1225 = vmatpush.xpose.msra.mxu0 %v1208
        %1226 = vmatmul.f32.gmra.mxu0 %v1206
        %v1227 = vpop.f32.mrf.mxu0
        %v1228 = vadd.f32 0.0, %v1227
        %1229 = vdwg.mxu0
        %1230 = vrot.lane.b32.xlu0 %v860, 64
        %v1231 = vpop.permute.xlu0 %1230
        %1232 = vrot.lane.b32.xlu0 %v903, 64
        %v1233 = vpop.permute.xlu0 %1232
        %v1234 = vsel %vm948, %v1231, 0
        %v1236 = vsel %vm948, %v1233, 0
        %1238 = vmatpush.xpose.msra.mxu0 0.0
        %1239 = vmatpush.xpose.msra.mxu0 0.0
        %1240 = vmatpush.xpose.msra.mxu0 0.0
        %1241 = vmatpush.xpose.msra.mxu0 0.0
        %1242 = vmatpush.xpose.msra.mxu0 0.0
        %1243 = vmatpush.xpose.msra.mxu0 0.0
        %1244 = vmatpush.xpose.msra.mxu0 0.0
        %1245 = vmatpush.xpose.msra.mxu0 0.0
        %1246 = vmatpush.xpose.msra.mxu0 0.0
        %1247 = vmatpush.xpose.msra.mxu0 0.0
        %1248 = vmatpush.xpose.msra.mxu0 0.0
        %1249 = vmatpush.xpose.msra.mxu0 0.0
        %1250 = vmatpush.xpose.msra.mxu0 0.0
        %1251 = vmatpush.xpose.msra.mxu0 0.0
        %1252 = vmatpush.xpose.msra.mxu0 0.0
        %1253 = vmatpush.xpose.msra.mxu0 %v1236
        %1254 = vmatmul.f32.gmra.mxu0 %v1234
        %v1255 = vpop.f32.mrf.mxu0
        %v1256 = vadd.f32 0.0, %v1255
        %1257 = vdwg.mxu0
        %v1258 = vsel %vm1001, %v1228, -inf
        %1259 = vmax.xlane.f32.xlu0 %v1258
        %v1260 = vpop.xlane.xlu0 %1259
        %v1261 = vsel %vm1001, %v1256, -inf
        %1262 = vmax.xlane.f32.xlu0 %v1261
        %v1263 = vpop.xlane.xlu0 %1262
        %v1264 = vsub.f32 %v1228, %v1260
        %v1265 = vsub.f32 %v1256, %v1263
        %v1266 = vmul.f32 %v1264, 1.442695
        %v1267 = vpow.pop %v1266
        %v1268 = vmul.f32 %v1265, 1.442695
        %v1269 = vpow.pop %v1268
        %v1270 = vsel %vm1001, %v1267, 0.0
        %1271 = vadd.xlane.f32.xlu0 %v1270
        %v1272 = vpop.xlane.xlu0 %1271
        %v1273 = vsel %vm1001, %v1269, 0.0
        %1274 = vadd.xlane.f32.xlu0 %v1273
        %v1275 = vpop.xlane.xlu0 %1274
        %1276 = vrot.lane.b32.xlu0 %v943, 64
        %v1277 = vpop.permute.xlu0 %1276
        %v1280 = vsel %vm1001, %v1267, 0
        %1282 = vmatpush.msra.mxu0 0.0
        %1283 = vmatpush.msra.mxu0 0.0
        %1284 = vmatpush.msra.mxu0 0.0
        %1285 = vmatpush.msra.mxu0 0.0
        %1286 = vmatpush.msra.mxu0 0.0
        %1287 = vmatpush.msra.mxu0 0.0
        %1288 = vmatpush.msra.mxu0 0.0
        %1289 = vmatpush.msra.mxu0 0.0
        %1290 = vmatpush.msra.mxu0 0.0
        %1291 = vmatpush.msra.mxu0 0.0
        %1292 = vmatpush.msra.mxu0 0.0
        %1293 = vmatpush.msra.mxu0 0.0
        %1294 = vmatpush.msra.mxu0 0.0
        %1295 = vmatpush.msra.mxu0 0.0
        %1296 = vmatpush.msra.mxu0 0.0
        %1297 = vmatpush.msra.mxu0 %v1277
        %1298 = vmatmul.f32.gmra.mxu0 %v1280
        %v1299 = vpop.f32.mrf.mxu0
        %v1300 = vadd.f32 0.0, %v1299
        %1301 = vdwg.mxu0
        %1302 = vrot.lane.b32.xlu0 %v946, 64
        %v1303 = vpop.permute.xlu0 %1302
        %v1306 = vsel %vm1001, %v1269, 0
        %1308 = vmatpush.msra.mxu0 0.0
        %1309 = vmatpush.msra.mxu0 0.0
        %1310 = vmatpush.msra.mxu0 0.0
        %1311 = vmatpush.msra.mxu0 0.0
        %1312 = vmatpush.msra.mxu0 0.0
        %1313 = vmatpush.msra.mxu0 0.0
        %1314 = vmatpush.msra.mxu0 0.0
        %1315 = vmatpush.msra.mxu0 0.0
        %1316 = vmatpush.msra.mxu0 0.0
        %1317 = vmatpush.msra.mxu0 0.0
        %1318 = vmatpush.msra.mxu0 0.0
        %1319 = vmatpush.msra.mxu0 0.0
        %1320 = vmatpush.msra.mxu0 0.0
        %1321 = vmatpush.msra.mxu0 0.0
        %1322 = vmatpush.msra.mxu0 0.0
        %1323 = vmatpush.msra.mxu0 %v1303
        %1324 = vmatmul.f32.gmra.mxu0 %v1306
        %v1325 = vpop.f32.mrf.mxu0
        %v1326 = vadd.f32 0.0, %v1325
        %1327 = vdwg.mxu0
        %v1328 = vrcp.pop %v1272
        %v1329 = vrcp.pop %v1275
        %v1330 = vmul.f32 %v1300, %v1328
        %v1331 = vmul.f32 %v1326, %v1329
        %1332 = vrot.lane.b32.xlu0 %v857, 32
        %v1333 = vpop.permute.xlu0 %1332
        %1334 = vrot.lane.b32.xlu0 %v900, 32
        %v1335 = vpop.permute.xlu0 %1334
        %v1336 = vsel %vm948, %v1333, 0
        %v1338 = vsel %vm948, %v1335, 0
        %1340 = vmatpush.xpose.msra.mxu0 0.0
        %1341 = vmatpush.xpose.msra.mxu0 0.0
        %1342 = vmatpush.xpose.msra.mxu0 0.0
        %1343 = vmatpush.xpose.msra.mxu0 0.0
        %1344 = vmatpush.xpose.msra.mxu0 0.0
        %1345 = vmatpush.xpose.msra.mxu0 0.0
        %1346 = vmatpush.xpose.msra.mxu0 0.0
        %1347 = vmatpush.xpose.msra.mxu0 0.0
        %1348 = vmatpush.xpose.msra.mxu0 0.0
        %1349 = vmatpush.xpose.msra.mxu0 0.0
        %1350 = vmatpush.xpose.msra.mxu0 0.0
        %1351 = vmatpush.xpose.msra.mxu0 0.0
        %1352 = vmatpush.xpose.msra.mxu0 0.0
        %1353 = vmatpush.xpose.msra.mxu0 0.0
        %1354 = vmatpush.xpose.msra.mxu0 0.0
        %1355 = vmatpush.xpose.msra.mxu0 %v1338
        %1356 = vmatmul.f32.gmra.mxu0 %v1336
        %v1357 = vpop.f32.mrf.mxu0
        %v1358 = vadd.f32 0.0, %v1357
        %1359 = vdwg.mxu0
        %1360 = vrot.lane.b32.xlu0 %v860, 32
        %v1361 = vpop.permute.xlu0 %1360
        %1362 = vrot.lane.b32.xlu0 %v903, 32
        %v1363 = vpop.permute.xlu0 %1362
        %v1364 = vsel %vm948, %v1361, 0
        %v1366 = vsel %vm948, %v1363, 0
        %1368 = vmatpush.xpose.msra.mxu0 0.0
        %1369 = vmatpush.xpose.msra.mxu0 0.0
        %1370 = vmatpush.xpose.msra.mxu0 0.0
        %1371 = vmatpush.xpose.msra.mxu0 0.0
        %1372 = vmatpush.xpose.msra.mxu0 0.0
        %1373 = vmatpush.xpose.msra.mxu0 0.0
        %1374 = vmatpush.xpose.msra.mxu0 0.0
        %1375 = vmatpush.xpose.msra.mxu0 0.0
        %1376 = vmatpush.xpose.msra.mxu0 0.0
        %1377 = vmatpush.xpose.msra.mxu0 0.0
        %1378 = vmatpush.xpose.msra.mxu0 0.0
        %1379 = vmatpush.xpose.msra.mxu0 0.0
        %1380 = vmatpush.xpose.msra.mxu0 0.0
        %1381 = vmatpush.xpose.msra.mxu0 0.0
        %1382 = vmatpush.xpose.msra.mxu0 0.0
        %1383 = vmatpush.xpose.msra.mxu0 %v1366
        %1384 = vmatmul.f32.gmra.mxu0 %v1364
        %v1385 = vpop.f32.mrf.mxu0
        %v1386 = vadd.f32 0.0, %v1385
        %1387 = vdwg.mxu0
        %v1388 = vsel %vm1001, %v1358, -inf
        %1389 = vmax.xlane.f32.xlu0 %v1388
        %v1390 = vpop.xlane.xlu0 %1389
        %v1391 = vsel %vm1001, %v1386, -inf
        %1392 = vmax.xlane.f32.xlu0 %v1391
        %v1393 = vpop.xlane.xlu0 %1392
        %v1394 = vsub.f32 %v1358, %v1390
        %v1395 = vsub.f32 %v1386, %v1393
        %v1396 = vmul.f32 %v1394, 1.442695
        %v1397 = vpow.pop %v1396
        %v1398 = vmul.f32 %v1395, 1.442695
        %v1399 = vpow.pop %v1398
        %v1400 = vsel %vm1001, %v1397, 0.0
        %1401 = vadd.xlane.f32.xlu0 %v1400
        %v1402 = vpop.xlane.xlu0 %1401
        %v1403 = vsel %vm1001, %v1399, 0.0
        %1404 = vadd.xlane.f32.xlu0 %v1403
        %v1405 = vpop.xlane.xlu0 %1404
        %1406 = vrot.lane.b32.xlu0 %v943, 32
        %v1407 = vpop.permute.xlu0 %1406
        %v1410 = vsel %vm1001, %v1397, 0
        %1412 = vmatpush.msra.mxu0 0.0
        %1413 = vmatpush.msra.mxu0 0.0
        %1414 = vmatpush.msra.mxu0 0.0
        %1415 = vmatpush.msra.mxu0 0.0
        %1416 = vmatpush.msra.mxu0 0.0
        %1417 = vmatpush.msra.mxu0 0.0
        %1418 = vmatpush.msra.mxu0 0.0
        %1419 = vmatpush.msra.mxu0 0.0
        %1420 = vmatpush.msra.mxu0 0.0
        %1421 = vmatpush.msra.mxu0 0.0
        %1422 = vmatpush.msra.mxu0 0.0
        %1423 = vmatpush.msra.mxu0 0.0
        %1424 = vmatpush.msra.mxu0 0.0
        %1425 = vmatpush.msra.mxu0 0.0
        %1426 = vmatpush.msra.mxu0 0.0
        %1427 = vmatpush.msra.mxu0 %v1407
        %1428 = vmatmul.f32.gmra.mxu0 %v1410
        %v1429 = vpop.f32.mrf.mxu0
        %v1430 = vadd.f32 0.0, %v1429
        %1431 = vdwg.mxu0
        %1432 = vrot.lane.b32.xlu0 %v946, 32
        %v1433 = vpop.permute.xlu0 %1432
        %v1436 = vsel %vm1001, %v1399, 0
        %1438 = vmatpush.msra.mxu0 0.0
        %1439 = vmatpush.msra.mxu0 0.0
        %1440 = vmatpush.msra.mxu0 0.0
        %1441 = vmatpush.msra.mxu0 0.0
        %1442 = vmatpush.msra.mxu0 0.0
        %1443 = vmatpush.msra.mxu0 0.0
        %1444 = vmatpush.msra.mxu0 0.0
        %1445 = vmatpush.msra.mxu0 0.0
        %1446 = vmatpush.msra.mxu0 0.0
        %1447 = vmatpush.msra.mxu0 0.0
        %1448 = vmatpush.msra.mxu0 0.0
        %1449 = vmatpush.msra.mxu0 0.0
        %1450 = vmatpush.msra.mxu0 0.0
        %1451 = vmatpush.msra.mxu0 0.0
        %1452 = vmatpush.msra.mxu0 0.0
        %1453 = vmatpush.msra.mxu0 %v1433
        %1454 = vmatmul.f32.gmra.mxu0 %v1436
        %v1455 = vpop.f32.mrf.mxu0
        %v1456 = vadd.f32 0.0, %v1455
        %1457 = vdwg.mxu0
        %v1458 = vrcp.pop %v1402
        %v1459 = vrcp.pop %v1405
        %v1460 = vmul.f32 %v1430, %v1458
        %v1461 = vmul.f32 %v1456, %v1459
        %1464 = vrot.lane.b32.xlu0 %v1200, 32
        %v1465 = vpop.permute.xlu0 %1464
        %1466 = vrot.lane.b32.xlu0 %v1201, 32
        %v1467 = vpop.permute.xlu0 %1466
        %1472 = vrot.lane.b32.xlu0 %v1330, 64
        %v1473 = vpop.permute.xlu0 %1472
        %1474 = vrot.lane.b32.xlu0 %v1331, 64
        %v1475 = vpop.permute.xlu0 %1474
        %1480 = vrot.lane.b32.xlu0 %v1460, 96
        %v1481 = vpop.permute.xlu0 %1480
        %1482 = vrot.lane.b32.xlu0 %v1461, 96
        %v1483 = vpop.permute.xlu0 %1482
        %v1486 = vsel %vm948, %v1068, %v1465
        %v1487 = vsel %vm948, %v1069, %v1467
        %vm1488 = vcmask 523264
        %v1489 = vsel %vm1488, %v1486, %v1473
        %v1490 = vsel %vm1488, %v1487, %v1475
        %vm1491 = vcmask 785408
        %v1492 = vsel %vm1491, %v1489, %v1481
        %v1493 = vsel %vm1491, %v1490, %v1483
        %v1494 = vld [vmem:[#allocation13] sm:$0xff]
        %v1495 = vld [vmem:[#allocation13 + $0x8] sm:$0xff]
        %v1496 = vld [vmem:[#allocation13 + $0x10] sm:$0xff]
        %v1497 = vld [vmem:[#allocation13 + $0x18] sm:$0xff]
        %v1498 = vld [vmem:[#allocation13 + $0x20] sm:$0xff]
        %v1499 = vld [vmem:[#allocation13 + $0x28] sm:$0xff]
        %v1500 = vld [vmem:[#allocation13 + $0x30] sm:$0xff]
        %v1501 = vld [vmem:[#allocation13 + $0x38] sm:$0xff]
        %v1502 = vld [vmem:[#allocation13 + $0x40] sm:$0xff]
        %v1503 = vld [vmem:[#allocation13 + $0x48] sm:$0xff]
        %v1504 = vld [vmem:[#allocation13 + $0x50] sm:$0xff]
        %v1505 = vld [vmem:[#allocation13 + $0x58] sm:$0xff]
        %v1506 = vld [vmem:[#allocation13 + $0x60] sm:$0xff]
        %v1507 = vld [vmem:[#allocation13 + $0x68] sm:$0xff]
        %v1508 = vld [vmem:[#allocation13 + $0x70] sm:$0xff]
        %v1509 = vld [vmem:[#allocation13 + $0x78] sm:$0xff]
        %v1510 = vld [vmem:[%s14] sm:$0x1]
        %v1512 = vperm.slane %v1510, 0
        %1514 = vmatpush.msra.mxu0 %v1509
        %1515 = vmatpush.msra.mxu0 %v1508
        %1516 = vmatpush.msra.mxu0 %v1507
        %1517 = vmatpush.msra.mxu0 %v1506
        %1518 = vmatpush.msra.mxu0 %v1505
        %1519 = vmatpush.msra.mxu0 %v1504
        %1520 = vmatpush.msra.mxu0 %v1503
        %1521 = vmatpush.msra.mxu0 %v1502
        %1522 = vmatpush.msra.mxu0 %v1501
        %1523 = vmatpush.msra.mxu0 %v1500
        %1524 = vmatpush.msra.mxu0 %v1499
        %1525 = vmatpush.msra.mxu0 %v1498
        %1526 = vmatpush.msra.mxu0 %v1497
        %1527 = vmatpush.msra.mxu0 %v1496
        %1528 = vmatpush.msra.mxu0 %v1495
        %1529 = vmatpush.msra.mxu0 %v1494
        %1530 = vmatmul.f32.gmra.mxu0 %v1492
        %v1531 = vpop.f32.mrf.mxu0
        %v1532 = vadd.f32 %v1512, %v1531
        %1533 = vmatmul.f32.gmra.mxu0 %v1493
        %v1534 = vpop.f32.mrf.mxu0
        %v1535 = vadd.f32 %v1512, %v1534
        %1536 = vdwg.mxu0
        %v1537 = vadd.f32 %v668, %v1532
        %v1538 = vadd.f32 %v669, %v1535
        %v1539 = vld [vmem:[%s5] sm:$0x1]
        %v1540 = vld [vmem:[%s6] sm:$0x1]
        %1541 = vadd.xlane.f32.xlu0 %v1537
        %v1542 = vpop.xlane.xlu0 %1541
        %1543 = vadd.xlane.f32.xlu0 %v1538
        %v1544 = vpop.xlane.xlu0 %1543
        %v1545 = vmul.f32 %v1542, %v680
        %v1546 = vmul.f32 %v1544, %v680
        %v1547 = vsub.f32 %v1537, %v1545
        %v1548 = vsub.f32 %v1538, %v1546
        %v1549 = vmul.f32 %v1547, %v1547
        %v1550 = vmul.f32 %v1548, %v1548
        %1551 = vadd.xlane.f32.xlu0 %v1549
        %v1552 = vpop.xlane.xlu0 %1551
        %1553 = vadd.xlane.f32.xlu0 %v1550
        %v1554 = vpop.xlane.xlu0 %1553
        %v1555 = vmul.f32 %v1552, %v680
        %v1556 = vmul.f32 %v1554, %v680
        %v1557 = vadd.f32 %v1555, 1e-05
        %v1558 = vadd.f32 %v1556, 1e-05
        %v1559 = vrsqrt.pop %v1557
        %v1560 = vmul.f32 %v1559, %v1557
        %v1561 = vmul.f32 %v1560, %v1559
        %v1562 = vmul.f32 0.5, %v1561
        %v1563 = vsub.f32 1.5, %v1562
        %v1564 = vmul.f32 %v1559, %v1563
        %vm1565 = vweird.f32 %v1557
        %vm1566 = vweird.f32 %v1559
        %vm1567 = vmor %vm1565, %vm1566
        %v1568 = vsel %vm1567, %v1559, %v1564
        %v1569 = vrsqrt.pop %v1558
        %v1570 = vmul.f32 %v1569, %v1558
        %v1571 = vmul.f32 %v1570, %v1569
        %v1572 = vmul.f32 0.5, %v1571
        %v1573 = vsub.f32 1.5, %v1572
        %v1574 = vmul.f32 %v1569, %v1573
        %vm1575 = vweird.f32 %v1558
        %vm1576 = vweird.f32 %v1569
        %vm1577 = vmor %vm1575, %vm1576
        %v1578 = vsel %vm1577, %v1569, %v1574
        %v1579 = vmul.f32 %v1547, %v1568
        %v1580 = vmul.f32 %v1548, %v1578
        %v1582 = vperm.slane %v1539, 0
        %v1584 = vmul.f32 %v1579, %v1582
        %v1585 = vmul.f32 %v1580, %v1582
        %v1587 = vperm.slane %v1540, 0
        %v1589 = vadd.f32 %v1584, %v1587
        %v1590 = vadd.f32 %v1585, %v1587
        %1591 = vst [vmem:[%s661] sm:$0xff] %v1589
        %1592 = vst [vmem:[%s661 + $0x8] sm:$0xff] %v1590
        %s1593 = sand.u32 %s375, 1
        %s1594 = scalar_lea.sflag [#allocation4], %s1593
        %s1595 = sand.u32 %s375, 1
        %s1596 = smul.addr %s1595, 16
        %s1597 = scalar_lea.vmem [#allocation14], %s1596
        // Predicated region
        $region109: #{tpu_custom_call.1} parent=79 // pred_check
          %p1598 = pneg %p385
        $region110: #{tpu_custom_call.1} parent=79 // pred_check_branch
          %1600 = sbr.rel (%p1598) target = $region112
        $region111: #{tpu_custom_call.1} parent=79 // pred_region
          %s1601 = smul.u32 2, %s37
          %1603 = vsyncadd %s1594, 0
          %s1604 = smul.addr %s1601, 8
          %s1605 = scalar_lea.hbm %s15, %s1604
          %s1606 = sshll.u32 %s1597, 4
          %s1607 = int_to_ptr.vmem [resolvable:$true] %s1606
          %s1608 = sshll.u32 %s1605, 4
          %s1609 = int_to_ptr.hbm [resolvable:$true] %s1608
          %1614 = dma.vmem_to_hbm [thread:$0]  %s1607, 256, %s1609, %s1594, 128, 128, 8
        $region112: #{tpu_custom_call.1} parent=79 // pred_fallthru
          _
      $region80: #{tpu_custom_call.1} parent=5 // pred_fallthru
        _
      %p1615 = scmp.le.s32.totalorder 2, %s32
      // Predicated region
      $region113: #{tpu_custom_call.1} parent=5 // pred_check
        %p1616 = pneg %p1615
      $region114: #{tpu_custom_call.1} parent=5 // pred_check_branch
        %1618 = sbr.rel (%p1616) target = $region116
      $region115: #{tpu_custom_call.1} parent=5 // pred_region
        %s1619 = ssub.s32 %s32, 2
        // Predicated region
        $region117: #{tpu_custom_call.1} parent=115 // pred_check
          %p1620 = pneg %p391
        $region118: #{tpu_custom_call.1} parent=115 // pred_check_branch
          %1622 = sbr.rel (%p1620) target = $region120
        $region119: #{tpu_custom_call.1} parent=115 // pred_region
          %s1623 = sand.u32 %s376, 1
          %s1624 = scalar_lea.sflag [#allocation4], %s1623
          %s1625 = sand.u32 %s376, 1
          %s1626 = smul.addr %s1625, 16
          %s1627 = scalar_lea.vmem [#allocation14], %s1626
          %1629 = dma.done %s1624, 256
        $region120: #{tpu_custom_call.1} parent=115 // pred_fallthru
          _
      $region116: #{tpu_custom_call.1} parent=5 // pred_fallthru
        _
    $region6: #{tpu_custom_call.1} parent=1 // loop_footer
      %s36 = sadd.s32 1, %s32
    $region7: #{tpu_custom_call.1} parent=1 // loop_footer_branch
      %31 = sbr.rel target = $region3
    $region8: #{tpu_custom_call.1} parent=1 // loop_exit
      _
    %1630 = vsyncpa [#allocation3], 1
    %s1631 = scalar_lea.sflag [#allocation3], 1
    %1632 = vsyncpa %s1631, 1
    %1633 = vsyncpa [#allocation6], 1
    %s1634 = scalar_lea.sflag [#allocation6], 1
    %1635 = vsyncpa %s1634, 1
    %1636 = vsyncpa [#allocation9], 1
    %1637 = vsyncpa [#allocation12], 1
    %1638 = vsyncpa [#allocation4], 1
    %s1639 = scalar_lea.sflag [#allocation4], 1
    %1640 = vsyncpa %s1639, 1

</llo_original>
